<compile_context>
chip_gen: v6e
topology: v6e:2x2x1
jax: 0.10.0
libtpu: 0.0.40
codegen_flags: <defaults>
</compile_context>

<pallas_src>
import functools

import jax
import jax.numpy as jnp
from jax.experimental import pallas as pl
from jax.experimental.pallas import tpu as pltpu


# ---------------------------------------------------------------------------
# Fused Pallas kernel (one grid step == one batch element)
# ---------------------------------------------------------------------------

def _mha_fused_kernel(
    q_ref, qp_ref, k_ref, kp_ref, v_ref, id_ref,   # per-batch activations (L, E)
    wq_ref, wk_ref, wv_ref,                        # (H, E, Dh) head-major weights
    bq_ref, bk_ref, bv_ref,                        # (H, 1, Dh) head-major biases
    wo_ref, bo_ref,                                # (H, Dh, E), (1, E)
    o_ref,                                         # per-batch output (Lq, E)
):
    h = wq_ref.shape[0]
    lq, e = q_ref.shape
    lk = k_ref.shape[0]
    cd = wq_ref.dtype          # matmul-operand dtype (bf16 on v6e/v7x, f32 for parity)

    # 1) Positional-encoding add, fused, kept in f32 on the VPU.
    q_in = q_ref[...] + qp_ref[...]                 # (Lq, E)
    k_in = k_ref[...] + kp_ref[...]                 # (Lk, E)
    v_in = v_ref[...]                               # (Lk, E)

    # 2) Head-batched in-projections (exactly 1x projection FLOPs).  The head
    #    scale is pre-folded into wq/bq on the host.  Broadcasting the shared
    #    activation over the head axis keeps every contraction a canonical
    #    leading-batch 3-D dot_general (no transposes / relayouts in-kernel).
    qb = jnp.broadcast_to(q_in.astype(cd), (h, lq, e))
    kb = jnp.broadcast_to(k_in.astype(cd), (h, lk, e))
    vb = jnp.broadcast_to(v_in.astype(cd), (h, lk, e))

    qh = jnp.einsum("hqe,hed->hqd", qb, wq_ref[...],
                    preferred_element_type=jnp.float32) + bq_ref[...]   # (H, Lq, Dh)
    kh = jnp.einsum("hke,hed->hkd", kb, wk_ref[...],
                    preferred_element_type=jnp.float32) + bk_ref[...]   # (H, Lk, Dh)
    vh = jnp.einsum("hke,hed->hkd", vb, wv_ref[...],
                    preferred_element_type=jnp.float32) + bv_ref[...]   # (H, Lk, Dh)

    # 3) Attention scores, f32 accumulation on the MXU (no explicit k.T).
    s = jnp.einsum("hqd,hkd->hqk", qh.astype(cd), kh.astype(cd),
                   preferred_element_type=jnp.float32)                  # (H, Lq, Lk)

    # 4) Numerically-stable softmax; stats stay f32.  Normalisation is applied
    #    AFTER the PV matmul (H*Lq*Dh multiplies instead of H*Lq*Lk) via the
    #    EUP approximate reciprocal (frees the VALU slot).
    m = jnp.max(s, axis=-1, keepdims=True)
    p = jnp.exp(s - m)
    denom = jnp.sum(p, axis=-1, keepdims=True)

    oh = jnp.einsum("hqk,hkd->hqd", p.astype(cd), vh.astype(cd),
                    preferred_element_type=jnp.float32)                 # (H, Lq, Dh)
    oh = oh * pl.reciprocal(denom, approx=True)

    # 5) Output projection with the head merge folded in: per-head partial
    #    projections accumulated over the head axis (cheap leading-dim sum),
    #    then output bias + identity residual, all fused.
    oproj = jnp.einsum("hqd,hde->hqe", oh.astype(cd), wo_ref[...],
                       preferred_element_type=jnp.float32)              # (H, Lq, E)
    out = jnp.sum(oproj, axis=0) + bo_ref[...] + id_ref[...]            # (Lq, E)
    o_ref[...] = out.astype(o_ref.dtype)


# ---------------------------------------------------------------------------
# Module-equivalent forward
# ---------------------------------------------------------------------------

def init_params(key, embed_dims):
    """Deterministic synthetic params matching nn.MultiheadAttention shapes."""
    k1, k2, k3, k4 = jax.random.split(key, 4)
    e = embed_dims
    return {
        "in_proj_weight": jax.random.normal(k1, (3 * e, e), jnp.float32) * 0.05,
        "in_proj_bias": jax.random.normal(k2, (3 * e,), jnp.float32) * 0.05,
        "out_proj_weight": jax.random.normal(k3, (e, e), jnp.float32) * 0.05,
        "out_proj_bias": jax.random.normal(k4, (e,), jnp.float32) * 0.05,
    }


def multihead_attention_forward(
    params,
    num_heads,
    query,
    key=None,
    value=None,
    identity=None,
    query_pos=None,
    key_pos=None,
    compute_dtype=jnp.bfloat16,   # MXU operands only; use jnp.float32 for exact parity
):
    """Mirror of MultiheadAttention.forward (batch_first=False, no masks, dropout=0)."""
    if key is None:
        key = query
    if value is None:
        value = key
    if identity is None:
        identity = query
    if key_pos is None and query_pos is not None and query_pos.shape == key.shape:
        key_pos = query_pos

    lq, b, e = query.shape
    lk = key.shape[0]
    h = num_heads
    dh = e // h
    scale = float(dh) ** -0.5
    cd = compute_dtype

    # ---- one-time parameter repack (host side; tiny, constant under jit) ----
    w_in = params["in_proj_weight"]          # (3E, E) torch layout (out, in)
    b_in = params["in_proj_bias"]            # (3E,)

    def head_major(w):                       # (E_out, E_in) -> (H, E_in, Dh)
        return jnp.transpose(w.T.reshape(e, h, dh), (1, 0, 2))

    wq_h = head_major(w_in[0:e] * scale).astype(cd)      # head scale folded in
    wk_h = head_major(w_in[e:2 * e]).astype(cd)
    wv_h = head_major(w_in[2 * e:3 * e]).astype(cd)
    bq_h = (b_in[0:e] * scale).reshape(h, 1, dh)          # biases stay f32
    bk_h = b_in[e:2 * e].reshape(h, 1, dh)
    bv_h = b_in[2 * e:3 * e].reshape(h, 1, dh)
    wo_h = params["out_proj_weight"].T.reshape(h, dh, e).astype(cd)
    bo = params["out_proj_bias"].reshape(1, e)

    # ---- batch-first layout (B, L, E) so the grid is a clean parallel batch axis ----
    qb = jnp.swapaxes(query, 0, 1)
    kb = jnp.swapaxes(key, 0, 1)
    vb = jnp.swapaxes(value, 0, 1)
    idb = jnp.swapaxes(identity, 0, 1)
    qpb = jnp.swapaxes(query_pos, 0, 1) if query_pos is not None else jnp.zeros_like(qb)
    kpb = jnp.swapaxes(key_pos, 0, 1) if key_pos is not None else jnp.zeros_like(kb)

    act_q = pl.BlockSpec((None, lq, e), lambda i: (i, 0, 0))
    act_k = pl.BlockSpec((None, lk, e), lambda i: (i, 0, 0))
    w3 = lambda s: pl.BlockSpec(s, lambda i: (0, 0, 0))   # constant 3-D weight block
    w2 = lambda s: pl.BlockSpec(s, lambda i: (0, 0))      # constant 2-D weight block

    out_batched = pl.pallas_call(
        _mha_fused_kernel,
        out_shape=jax.ShapeDtypeStruct((b, lq, e), query.dtype),
        grid=(b,),
        in_specs=[
            act_q,                 # query
            act_q,                 # query_pos
            act_k,                 # key
            act_k,                 # key_pos
            act_k,                 # value
            act_q,                 # identity
            w3((h, e, dh)),        # W_q (head-major, scale folded)
            w3((h, e, dh)),        # W_k
            w3((h, e, dh)),        # W_v
            w3((h, 1, dh)),        # b_q (scaled)
            w3((h, 1, dh)),        # b_k
            w3((h, 1, dh)),        # b_v
            w3((h, dh, e)),        # W_out (head-major)
            w2((1, e)),            # b_out
        ],
        out_specs=pl.BlockSpec((None, lq, e), lambda i: (i, 0, 0)),
        compiler_params=pltpu.CompilerParams(
            dimension_semantics=("parallel",)),   # v7x: two TCs split the batch grid
    )(qb, qpb, kb, kpb, vb, idb, wq_h, wk_h, wv_h, bq_h, bk_h, bv_h, wo_h, bo)

    return jnp.swapaxes(out_batched, 0, 1)      # back to (Lq, B, E)


# ---------------------------------------------------------------------------
# Main
# ---------------------------------------------------------------------------

if __name__ == "__main__":
    num_queries = 8
    batch = 2
    embed_dims = 32
    num_heads = 4

    root = jax.random.PRNGKey(0)
    kparam, kq, kpos = jax.random.split(root, 3)

    params = init_params(kparam, embed_dims)

    # batch_first=False layout: [num_queries, batch, embed_dims]
    query = jax.random.normal(kq, (num_queries, batch, embed_dims), jnp.float32)
    query_pos = jax.random.normal(kpos, (num_queries, batch, embed_dims), jnp.float32)

    fwd = jax.jit(functools.partial(multihead_attention_forward, params, num_heads))
    out = fwd(query, query_pos=query_pos)   # key/value/identity default to query
    out = jax.block_until_ready(out)

    assert out.shape == (num_queries, batch, embed_dims)
    assert bool(jnp.all(jnp.isfinite(out)))
    print("KERNEL_OK")
</pallas_src>

<mosaic_0001>
module attributes {stable_mosaic.version = 11 : i64} {
  func.func @_mha_fused_kernel(%arg0: i32, %arg1: memref<1x8x32xf32, #tpu.memory_space<vmem>>, %arg2: memref<1x8x32xf32, #tpu.memory_space<vmem>>, %arg3: memref<1x8x32xf32, #tpu.memory_space<vmem>>, %arg4: memref<1x8x32xf32, #tpu.memory_space<vmem>>, %arg5: memref<1x8x32xf32, #tpu.memory_space<vmem>>, %arg6: memref<1x8x32xf32, #tpu.memory_space<vmem>>, %arg7: memref<4x32x8xbf16, #tpu.memory_space<vmem>>, %arg8: memref<4x32x8xbf16, #tpu.memory_space<vmem>>, %arg9: memref<4x32x8xbf16, #tpu.memory_space<vmem>>, %arg10: memref<4x1x8xf32, #tpu.memory_space<vmem>>, %arg11: memref<4x1x8xf32, #tpu.memory_space<vmem>>, %arg12: memref<4x1x8xf32, #tpu.memory_space<vmem>>, %arg13: memref<4x8x32xbf16, #tpu.memory_space<vmem>>, %arg14: memref<1x32xf32, #tpu.memory_space<vmem>>, %arg15: memref<1x8x32xf32, #tpu.memory_space<vmem>>) attributes {dimension_semantics = [#tpu.dimension_semantics<parallel>], iteration_bounds = array<i64: 2>, scalar_prefetch = 0 : i64, scratch_operands = 0 : i64, tpu.core_type = #tpu.core_type<tc>, window_params = [{transform_indices = @transform_0, window_bounds = array<i64: 1, 8, 32>}, {transform_indices = @transform_1, window_bounds = array<i64: 1, 8, 32>}, {transform_indices = @transform_2, window_bounds = array<i64: 1, 8, 32>}, {transform_indices = @transform_3, window_bounds = array<i64: 1, 8, 32>}, {transform_indices = @transform_4, window_bounds = array<i64: 1, 8, 32>}, {transform_indices = @transform_5, window_bounds = array<i64: 1, 8, 32>}, {pipeline_mode = #tpu.pipeline_mode<synchronous>, transform_indices = @transform_6, window_bounds = array<i64: 4, 32, 8>}, {pipeline_mode = #tpu.pipeline_mode<synchronous>, transform_indices = @transform_7, window_bounds = array<i64: 4, 32, 8>}, {pipeline_mode = #tpu.pipeline_mode<synchronous>, transform_indices = @transform_8, window_bounds = array<i64: 4, 32, 8>}, {pipeline_mode = #tpu.pipeline_mode<synchronous>, transform_indices = @transform_9, window_bounds = array<i64: 4, 1, 8>}, {pipeline_mode = #tpu.pipeline_mode<synchronous>, transform_indices = @transform_10, window_bounds = array<i64: 4, 1, 8>}, {pipeline_mode = #tpu.pipeline_mode<synchronous>, transform_indices = @transform_11, window_bounds = array<i64: 4, 1, 8>}, {pipeline_mode = #tpu.pipeline_mode<synchronous>, transform_indices = @transform_12, window_bounds = array<i64: 4, 8, 32>}, {pipeline_mode = #tpu.pipeline_mode<synchronous>, transform_indices = @transform_13, window_bounds = array<i64: 1, 32>}, {transform_indices = @transform_14, window_bounds = array<i64: 1, 8, 32>}]} {
    %c0 = arith.constant 0 : index
    %c0_0 = arith.constant 0 : index
    %c0_1 = arith.constant 0 : index
    %0 = vector.load %arg1[%c0, %c0_0, %c0_1] : memref<1x8x32xf32, #tpu.memory_space<vmem>>, vector<1x8x32xf32>
    %1 = vector.shape_cast %0 : vector<1x8x32xf32> to vector<8x32xf32>
    %c0_2 = arith.constant 0 : index
    %c0_3 = arith.constant 0 : index
    %c0_4 = arith.constant 0 : index
    %2 = vector.load %arg2[%c0_2, %c0_3, %c0_4] : memref<1x8x32xf32, #tpu.memory_space<vmem>>, vector<1x8x32xf32>
    %3 = vector.shape_cast %2 : vector<1x8x32xf32> to vector<8x32xf32>
    %4 = arith.addf %1, %3 : vector<8x32xf32>
    %c0_5 = arith.constant 0 : index
    %c0_6 = arith.constant 0 : index
    %c0_7 = arith.constant 0 : index
    %5 = vector.load %arg3[%c0_5, %c0_6, %c0_7] : memref<1x8x32xf32, #tpu.memory_space<vmem>>, vector<1x8x32xf32>
    %6 = vector.shape_cast %5 : vector<1x8x32xf32> to vector<8x32xf32>
    %c0_8 = arith.constant 0 : index
    %c0_9 = arith.constant 0 : index
    %c0_10 = arith.constant 0 : index
    %7 = vector.load %arg4[%c0_8, %c0_9, %c0_10] : memref<1x8x32xf32, #tpu.memory_space<vmem>>, vector<1x8x32xf32>
    %8 = vector.shape_cast %7 : vector<1x8x32xf32> to vector<8x32xf32>
    %9 = arith.addf %6, %8 : vector<8x32xf32>
    %c0_11 = arith.constant 0 : index
    %c0_12 = arith.constant 0 : index
    %c0_13 = arith.constant 0 : index
    %10 = vector.load %arg5[%c0_11, %c0_12, %c0_13] : memref<1x8x32xf32, #tpu.memory_space<vmem>>, vector<1x8x32xf32>
    %11 = vector.shape_cast %10 : vector<1x8x32xf32> to vector<8x32xf32>
    %12 = arith.truncf %4 : vector<8x32xf32> to vector<8x32xbf16>
    %13 = vector.shape_cast %12 : vector<8x32xbf16> to vector<1x8x32xbf16>
    %14 = vector.broadcast %13 : vector<1x8x32xbf16> to vector<4x8x32xbf16>
    %15 = arith.truncf %9 : vector<8x32xf32> to vector<8x32xbf16>
    %16 = vector.shape_cast %15 : vector<8x32xbf16> to vector<1x8x32xbf16>
    %17 = vector.broadcast %16 : vector<1x8x32xbf16> to vector<4x8x32xbf16>
    %18 = arith.truncf %11 : vector<8x32xf32> to vector<8x32xbf16>
    %19 = vector.shape_cast %18 : vector<8x32xbf16> to vector<1x8x32xbf16>
    %20 = vector.broadcast %19 : vector<1x8x32xbf16> to vector<4x8x32xbf16>
    %c0_14 = arith.constant 0 : index
    %c0_15 = arith.constant 0 : index
    %c0_16 = arith.constant 0 : index
    %21 = vector.load %arg7[%c0_14, %c0_15, %c0_16] : memref<4x32x8xbf16, #tpu.memory_space<vmem>>, vector<4x32x8xbf16>
    "tpu.trace_start"() <{level = 10 : i32, message = "hqe,hed->hqd"}> : () -> ()
    %cst = arith.constant dense<0.000000e+00> : vector<4x8x8xf32>
    %22 = tpu.matmul %14, %21, %cst {dimension_numbers = #tpu.dot_dimension_numbers<[2], [1], [1], [2], [0, 0, 0, 1, 1, 2], [0], [0]>} : vector<4x8x32xbf16>, vector<4x32x8xbf16>, vector<4x8x8xf32> -> vector<4x8x8xf32>
    "tpu.trace_stop"() : () -> ()
    %c0_17 = arith.constant 0 : index
    %c0_18 = arith.constant 0 : index
    %c0_19 = arith.constant 0 : index
    %23 = vector.load %arg10[%c0_17, %c0_18, %c0_19] : memref<4x1x8xf32, #tpu.memory_space<vmem>>, vector<4x1x8xf32>
    %24 = vector.broadcast %23 : vector<4x1x8xf32> to vector<4x8x8xf32>
    %25 = arith.addf %22, %24 : vector<4x8x8xf32>
    %c0_20 = arith.constant 0 : index
    %c0_21 = arith.constant 0 : index
    %c0_22 = arith.constant 0 : index
    %26 = vector.load %arg8[%c0_20, %c0_21, %c0_22] : memref<4x32x8xbf16, #tpu.memory_space<vmem>>, vector<4x32x8xbf16>
    "tpu.trace_start"() <{level = 10 : i32, message = "hke,hed->hkd"}> : () -> ()
    %cst_23 = arith.constant dense<0.000000e+00> : vector<4x8x8xf32>
    %27 = tpu.matmul %17, %26, %cst_23 {dimension_numbers = #tpu.dot_dimension_numbers<[2], [1], [1], [2], [0, 0, 0, 1, 1, 2], [0], [0]>} : vector<4x8x32xbf16>, vector<4x32x8xbf16>, vector<4x8x8xf32> -> vector<4x8x8xf32>
    "tpu.trace_stop"() : () -> ()
    %c0_24 = arith.constant 0 : index
    %c0_25 = arith.constant 0 : index
    %c0_26 = arith.constant 0 : index
    %28 = vector.load %arg11[%c0_24, %c0_25, %c0_26] : memref<4x1x8xf32, #tpu.memory_space<vmem>>, vector<4x1x8xf32>
    %29 = vector.broadcast %28 : vector<4x1x8xf32> to vector<4x8x8xf32>
    %30 = arith.addf %27, %29 : vector<4x8x8xf32>
    %c0_27 = arith.constant 0 : index
    %c0_28 = arith.constant 0 : index
    %c0_29 = arith.constant 0 : index
    %31 = vector.load %arg9[%c0_27, %c0_28, %c0_29] : memref<4x32x8xbf16, #tpu.memory_space<vmem>>, vector<4x32x8xbf16>
    "tpu.trace_start"() <{level = 10 : i32, message = "hke,hed->hkd"}> : () -> ()
    %cst_30 = arith.constant dense<0.000000e+00> : vector<4x8x8xf32>
    %32 = tpu.matmul %20, %31, %cst_30 {dimension_numbers = #tpu.dot_dimension_numbers<[2], [1], [1], [2], [0, 0, 0, 1, 1, 2], [0], [0]>} : vector<4x8x32xbf16>, vector<4x32x8xbf16>, vector<4x8x8xf32> -> vector<4x8x8xf32>
    "tpu.trace_stop"() : () -> ()
    %c0_31 = arith.constant 0 : index
    %c0_32 = arith.constant 0 : index
    %c0_33 = arith.constant 0 : index
    %33 = vector.load %arg12[%c0_31, %c0_32, %c0_33] : memref<4x1x8xf32, #tpu.memory_space<vmem>>, vector<4x1x8xf32>
    %34 = vector.broadcast %33 : vector<4x1x8xf32> to vector<4x8x8xf32>
    %35 = arith.addf %32, %34 : vector<4x8x8xf32>
    %36 = arith.truncf %25 : vector<4x8x8xf32> to vector<4x8x8xbf16>
    %37 = arith.truncf %30 : vector<4x8x8xf32> to vector<4x8x8xbf16>
    "tpu.trace_start"() <{level = 10 : i32, message = "hqd,hkd->hqk"}> : () -> ()
    %cst_34 = arith.constant dense<0.000000e+00> : vector<4x8x8xf32>
    %38 = tpu.matmul %36, %37, %cst_34 {dimension_numbers = #tpu.dot_dimension_numbers<[2], [2], [1], [1], [0, 0, 0, 1, 1, 1], [0], [0]>} : vector<4x8x8xbf16>, vector<4x8x8xbf16>, vector<4x8x8xf32> -> vector<4x8x8xf32>
    "tpu.trace_stop"() : () -> ()
    %cst_35 = arith.constant dense<0xFF800000> : vector<4x8xf32>
    %39 = vector.multi_reduction <maximumf>, %38, %cst_35 [2] : vector<4x8x8xf32> to vector<4x8xf32>
    %40 = vector.shape_cast %39 : vector<4x8xf32> to vector<4x8x1xf32>
    %41 = vector.broadcast %40 : vector<4x8x1xf32> to vector<4x8x8xf32>
    %42 = arith.subf %38, %41 : vector<4x8x8xf32>
    %43 = math.exp %42 : vector<4x8x8xf32>
    %cst_36 = arith.constant dense<0.000000e+00> : vector<4x8xf32>
    %44 = vector.multi_reduction <add>, %43, %cst_36 [2] : vector<4x8x8xf32> to vector<4x8xf32>
    %45 = vector.shape_cast %44 : vector<4x8xf32> to vector<4x8x1xf32>
    %46 = arith.truncf %43 : vector<4x8x8xf32> to vector<4x8x8xbf16>
    %47 = arith.truncf %35 : vector<4x8x8xf32> to vector<4x8x8xbf16>
    "tpu.trace_start"() <{level = 10 : i32, message = "hqk,hkd->hqd"}> : () -> ()
    %cst_37 = arith.constant dense<0.000000e+00> : vector<4x8x8xf32>
    %48 = tpu.matmul %46, %47, %cst_37 {dimension_numbers = #tpu.dot_dimension_numbers<[2], [1], [1], [2], [0, 0, 0, 1, 1, 2], [0], [0]>} : vector<4x8x8xbf16>, vector<4x8x8xbf16>, vector<4x8x8xf32> -> vector<4x8x8xf32>
    "tpu.trace_stop"() : () -> ()
    %49 = tpu.reciprocal %45 {approx = true} : vector<4x8x1xf32> -> vector<4x8x1xf32>
    %50 = vector.broadcast %49 : vector<4x8x1xf32> to vector<4x8x8xf32>
    %51 = arith.mulf %48, %50 : vector<4x8x8xf32>
    %52 = arith.truncf %51 : vector<4x8x8xf32> to vector<4x8x8xbf16>
    %c0_38 = arith.constant 0 : index
    %c0_39 = arith.constant 0 : index
    %c0_40 = arith.constant 0 : index
    %53 = vector.load %arg13[%c0_38, %c0_39, %c0_40] : memref<4x8x32xbf16, #tpu.memory_space<vmem>>, vector<4x8x32xbf16>
    "tpu.trace_start"() <{level = 10 : i32, message = "hqd,hde->hqe"}> : () -> ()
    %cst_41 = arith.constant dense<0.000000e+00> : vector<4x8x32xf32>
    %54 = tpu.matmul %52, %53, %cst_41 {dimension_numbers = #tpu.dot_dimension_numbers<[2], [1], [1], [2], [0, 0, 0, 1, 1, 2], [0], [0]>} : vector<4x8x8xbf16>, vector<4x8x32xbf16>, vector<4x8x32xf32> -> vector<4x8x32xf32>
    "tpu.trace_stop"() : () -> ()
    %cst_42 = arith.constant dense<0.000000e+00> : vector<8x32xf32>
    %55 = vector.multi_reduction <add>, %54, %cst_42 [0] : vector<4x8x32xf32> to vector<8x32xf32>
    %c0_43 = arith.constant 0 : index
    %c0_44 = arith.constant 0 : index
    %56 = vector.load %arg14[%c0_43, %c0_44] : memref<1x32xf32, #tpu.memory_space<vmem>>, vector<1x32xf32>
    %57 = vector.broadcast %56 : vector<1x32xf32> to vector<8x32xf32>
    %58 = arith.addf %55, %57 : vector<8x32xf32>
    %c0_45 = arith.constant 0 : index
    %c0_46 = arith.constant 0 : index
    %c0_47 = arith.constant 0 : index
    %59 = vector.load %arg6[%c0_45, %c0_46, %c0_47] : memref<1x8x32xf32, #tpu.memory_space<vmem>>, vector<1x8x32xf32>
    %60 = vector.shape_cast %59 : vector<1x8x32xf32> to vector<8x32xf32>
    %61 = arith.addf %58, %60 : vector<8x32xf32>
    %c0_48 = arith.constant 0 : index
    %c0_49 = arith.constant 0 : index
    %c0_50 = arith.constant 0 : index
    %62 = vector.load %arg15[%c0_48, %c0_49, %c0_50] : memref<1x8x32xf32, #tpu.memory_space<vmem>>, vector<1x8x32xf32>
    %63 = vector.shape_cast %62 : vector<1x8x32xf32> to vector<8x32xf32>
    %64 = vector.shape_cast %61 : vector<8x32xf32> to vector<1x8x32xf32>
    tpu.vector_store %arg15[%c0_48, %c0_49, %c0_50], %64 {strides = array<i32>} : memref<1x8x32xf32, #tpu.memory_space<vmem>>, vector<1x8x32xf32>,
    return
  }
  func.func @transform_0(%arg0: i32) -> (i32, i32, i32) {
    %c0_i32 = arith.constant 0 : i32
    %c0_i32_0 = arith.constant 0 : i32
    %c0_i32_1 = arith.constant 0 : i32
    return %arg0, %c0_i32, %c0_i32_0 : i32, i32, i32
  }
  func.func @transform_1(%arg0: i32) -> (i32, i32, i32) {
    %c0_i32 = arith.constant 0 : i32
    %c0_i32_0 = arith.constant 0 : i32
    %c0_i32_1 = arith.constant 0 : i32
    return %arg0, %c0_i32, %c0_i32_0 : i32, i32, i32
  }
  func.func @transform_2(%arg0: i32) -> (i32, i32, i32) {
    %c0_i32 = arith.constant 0 : i32
    %c0_i32_0 = arith.constant 0 : i32
    %c0_i32_1 = arith.constant 0 : i32
    return %arg0, %c0_i32, %c0_i32_0 : i32, i32, i32
  }
  func.func @transform_3(%arg0: i32) -> (i32, i32, i32) {
    %c0_i32 = arith.constant 0 : i32
    %c0_i32_0 = arith.constant 0 : i32
    %c0_i32_1 = arith.constant 0 : i32
    return %arg0, %c0_i32, %c0_i32_0 : i32, i32, i32
  }
  func.func @transform_4(%arg0: i32) -> (i32, i32, i32) {
    %c0_i32 = arith.constant 0 : i32
    %c0_i32_0 = arith.constant 0 : i32
    %c0_i32_1 = arith.constant 0 : i32
    return %arg0, %c0_i32, %c0_i32_0 : i32, i32, i32
  }
  func.func @transform_5(%arg0: i32) -> (i32, i32, i32) {
    %c0_i32 = arith.constant 0 : i32
    %c0_i32_0 = arith.constant 0 : i32
    %c0_i32_1 = arith.constant 0 : i32
    return %arg0, %c0_i32, %c0_i32_0 : i32, i32, i32
  }
  func.func @transform_6(%arg0: i32) -> (i32, i32, i32) {
    %c0_i32 = arith.constant 0 : i32
    %c0_i32_0 = arith.constant 0 : i32
    %c0_i32_1 = arith.constant 0 : i32
    %c0_i32_2 = arith.constant 0 : i32
    return %c0_i32, %c0_i32_0, %c0_i32_1 : i32, i32, i32
  }
  func.func @transform_7(%arg0: i32) -> (i32, i32, i32) {
    %c0_i32 = arith.constant 0 : i32
    %c0_i32_0 = arith.constant 0 : i32
    %c0_i32_1 = arith.constant 0 : i32
    %c0_i32_2 = arith.constant 0 : i32
    return %c0_i32, %c0_i32_0, %c0_i32_1 : i32, i32, i32
  }
  func.func @transform_8(%arg0: i32) -> (i32, i32, i32) {
    %c0_i32 = arith.constant 0 : i32
    %c0_i32_0 = arith.constant 0 : i32
    %c0_i32_1 = arith.constant 0 : i32
    %c0_i32_2 = arith.constant 0 : i32
    return %c0_i32, %c0_i32_0, %c0_i32_1 : i32, i32, i32
  }
  func.func @transform_9(%arg0: i32) -> (i32, i32, i32) {
    %c0_i32 = arith.constant 0 : i32
    %c0_i32_0 = arith.constant 0 : i32
    %c0_i32_1 = arith.constant 0 : i32
    %c0_i32_2 = arith.constant 0 : i32
    return %c0_i32, %c0_i32_0, %c0_i32_1 : i32, i32, i32
  }
  func.func @transform_10(%arg0: i32) -> (i32, i32, i32) {
    %c0_i32 = arith.constant 0 : i32
    %c0_i32_0 = arith.constant 0 : i32
    %c0_i32_1 = arith.constant 0 : i32
    %c0_i32_2 = arith.constant 0 : i32
    return %c0_i32, %c0_i32_0, %c0_i32_1 : i32, i32, i32
  }
  func.func @transform_11(%arg0: i32) -> (i32, i32, i32) {
    %c0_i32 = arith.constant 0 : i32
    %c0_i32_0 = arith.constant 0 : i32
    %c0_i32_1 = arith.constant 0 : i32
    %c0_i32_2 = arith.constant 0 : i32
    return %c0_i32, %c0_i32_0, %c0_i32_1 : i32, i32, i32
  }
  func.func @transform_12(%arg0: i32) -> (i32, i32, i32) {
    %c0_i32 = arith.constant 0 : i32
    %c0_i32_0 = arith.constant 0 : i32
    %c0_i32_1 = arith.constant 0 : i32
    %c0_i32_2 = arith.constant 0 : i32
    return %c0_i32, %c0_i32_0, %c0_i32_1 : i32, i32, i32
  }
  func.func @transform_13(%arg0: i32) -> (i32, i32) {
    %c0_i32 = arith.constant 0 : i32
    %c0_i32_0 = arith.constant 0 : i32
    %c0_i32_1 = arith.constant 0 : i32
    return %c0_i32, %c0_i32_0 : i32, i32
  }
  func.func @transform_14(%arg0: i32) -> (i32, i32, i32) {
    %c0_i32 = arith.constant 0 : i32
    %c0_i32_0 = arith.constant 0 : i32
    %c0_i32_1 = arith.constant 0 : i32
    return %arg0, %c0_i32, %c0_i32_0 : i32, i32, i32
  }
}

</mosaic_0001>

<llo_original>
// kernel: multihead_attention_forward.1
$region0: #{multihead_attention_forward.1}
  #allocation0 [shape = 'u32[]', space=smem, size = 0x4, offset = 0x4, fixed_abs, tag = 'smem constant byte address 0x4 - core index']
  #allocation1 [shape = 'u32[144,128]{1,0:T(1,128)}', space=vmem, size = 0x12000, scoped, tag = 'internal scratch']
  %s0 = inlined_call_operand.vmem [shape: f32[2,8,32], index: 0, kind: input, shape index: {}, may-alias: {0,2,4,5}]
  %s1 = inlined_call_operand.vmem [shape: f32[2,8,32], index: 1, kind: input, shape index: {}, may-alias: {1,3}]
  %s2 = inlined_call_operand.vmem [shape: f32[2,8,32], index: 2, kind: input, shape index: {}, may-alias: {0,2,4,5}]
  %s3 = inlined_call_operand.vmem [shape: f32[2,8,32], index: 3, kind: input, shape index: {}, may-alias: {1,3}]
  %s4 = inlined_call_operand.vmem [shape: f32[2,8,32], index: 4, kind: input, shape index: {}, may-alias: {0,2,4,5}]
  %s5 = inlined_call_operand.vmem [shape: f32[2,8,32], index: 5, kind: input, shape index: {}, may-alias: {0,2,4,5}]
  %s6 = inlined_call_operand.hbm [shape: bf16[4,32,8], index: 6, kind: input, shape index: {}]
  %s7 = inlined_call_operand.hbm [shape: bf16[4,32,8], index: 7, kind: input, shape index: {}]
  %s8 = inlined_call_operand.vmem [shape: bf16[4,32,8], index: 8, kind: input, shape index: {}]
  %s9 = inlined_call_operand.hbm [shape: f32[4,1,8], index: 9, kind: input, shape index: {}]
  %s10 = inlined_call_operand.hbm [shape: f32[4,1,8], index: 10, kind: input, shape index: {}]
  %s11 = inlined_call_operand.hbm [shape: f32[4,1,8], index: 11, kind: input, shape index: {}]
  %s12 = inlined_call_operand.vmem [shape: bf16[4,8,32], index: 12, kind: input, shape index: {}]
  %s13 = inlined_call_operand.vmem [shape: f32[1,32], index: 13, kind: input, shape index: {}]
  %s14 = inlined_call_operand.vmem [shape: f32[2,8,32], index: 14, kind: output, shape index: {}]
  %s15 = sld [smem:[#allocation0]]
  $region109: #{multihead_attention_forward.1} parent=0
    _
  %s17 = ssub.s32 1, %s15
  %s18 = scalar_select 0, %s17, %s15
  $region1: #{multihead_attention_forward.1} parent=0
    #allocation2 [shape = 'u8[32768]{0}', space=vmem, size = 0x8000, scoped, tag = 'input window, operand 6, single buffered']
    #allocation3 [shape = 's32[2]{0}', space=sflag, size = 0x8, scoped, tag = 'scoped memory for multihead_attention_forward.1']
    #allocation4 [shape = 'u8[32768]{0}', space=vmem, size = 0x8000, scoped, tag = 'input window, operand 7, single buffered']
    #allocation5 [shape = 's32[1]{0}', space=sflag, size = 0x4, scoped, tag = 'scoped memory for multihead_attention_forward.1']
    #allocation6 [shape = 'u8[2048]{0}', space=vmem, size = 0x800, scoped, tag = 'input window, operand 9, single buffered']
    #allocation7 [shape = 'u8[2048]{0}', space=vmem, size = 0x800, scoped, tag = 'input window, operand 10, single buffered']
    #allocation8 [shape = 's32[1]{0}', space=sflag, size = 0x4, scoped, tag = 'scoped memory for multihead_attention_forward.1']
    #allocation9 [shape = 'u8[2048]{0}', space=vmem, size = 0x800, scoped, tag = 'input window, operand 11, single buffered']
    %19 = vsyncpa [#allocation3], 0
    %20 = vsyncpa [#allocation5], 0
    %21 = vsyncpa [#allocation8], 0
    loop: start=0, step=1, limit=4
    $region2: #{multihead_attention_forward.1} parent=1 // loop_pre_header
      _
    $region3: #{multihead_attention_forward.1} parent=1 // loop_header
      %s23 = sphi 0, %s27
      %p24 = scmp.ge.s32.totalorder %s23, 4
      %s33 = sphi 0, %s35
      %s36 = sphi 0, %s33
      %s37 = sphi 0, %s36
      %s53 = sphi 0, %s37
      %s59 = sphi 0, %s61
      %s62 = sphi 0, %s59
      %s63 = sphi 0, %s62
      %s79 = sphi 0, %s63
      %s85 = sphi 0, %s87
      %s88 = sphi 0, %s85
      %s89 = sphi 0, %s88
      %s105 = sphi 0, %s89
      %s111 = sphi 0, %s113
      %s114 = sphi 0, %s111
      %s115 = sphi 0, %s114
      %s131 = sphi 0, %s115
      %s137 = sphi 0, %s139
      %s140 = sphi 0, %s137
      %s141 = sphi 0, %s140
      %s157 = sphi 0, %s141
      %s163 = sphi 0, %s165
      %s166 = sphi 0, %s163
      %s167 = sphi 0, %s166
      %s183 = sphi 0, %s167
      %s187 = sphi 0, %s187
      %s189 = sphi 0, %s187
      %s190 = sphi 0, %s189
      %s204 = sphi 0, %s190
      %s208 = sphi 0, %s208
      %s210 = sphi 0, %s208
      %s211 = sphi 0, %s210
      %s225 = sphi 0, %s211
      %s229 = sphi 0, %s229
      %s231 = sphi 0, %s229
      %s232 = sphi 0, %s231
      %s246 = sphi 0, %s232
      %s250 = sphi 0, %s250
      %s252 = sphi 0, %s250
      %s253 = sphi 0, %s252
      %s267 = sphi 0, %s253
      %s271 = sphi 0, %s271
      %s273 = sphi 0, %s271
      %s274 = sphi 0, %s273
      %s288 = sphi 0, %s274
      %s292 = sphi 0, %s292
      %s294 = sphi 0, %s292
      %s295 = sphi 0, %s294
      %s309 = sphi 0, %s295
      %s313 = sphi 0, %s313
      %s315 = sphi 0, %s313
      %s316 = sphi 0, %s315
      %s330 = sphi 0, %s316
      %s334 = sphi 0, %s334
      %s336 = sphi 0, %s334
      %s337 = sphi 0, %s336
      %s351 = sphi 0, %s337
      %s357 = sphi 0, %s359
      %s360 = sphi 0, %s357
      %s361 = sphi 0, %s360
      %s377 = sphi 0, %s361
    $region4: #{multihead_attention_forward.1} parent=1 // loop_header_branch
      %26 = sbr.rel (%p24) target = $region8
    $region5: #{multihead_attention_forward.1} parent=1 // loop_body
      %s28 = ssub.s32 %s23, 1
      %s29 = ssub.s32 %s23, 2
      %s30 = sadd.s32 %s23, 1
      %s31 = ssub.s32 %s23, %s30
      %p32 = scmp.eq.s32.totalorder %s31, 0
      %s34 = sadd.s32 %s33, 1
      %s35 = scalar_select %p32, %s33, %s34
      %p38 = pneg %p32
      %p39 = scmp.eq.s32.totalorder %s23, 1
      %p40 = por %p38, %p39
      %p41 = scmp.ne.s32.totalorder %s33, %s36
      %p42 = scmp.eq.s32.totalorder %s23, 0
      %p43 = por %p41, %p42
      %p44 = scmp.ne.s32.totalorder %s33, %s36
      %p45 = scmp.eq.s32.totalorder %s28, 1
      %p46 = por %p44, %p45
      %p47 = scmp.ne.s32.totalorder %s36, %s37
      %p48 = scmp.eq.s32.totalorder %s28, 0
      %p49 = por %p47, %p48
      %p50 = scmp.ne.s32.totalorder %s36, %s37
      %p51 = scmp.eq.s32.totalorder %s29, 1
      %p52 = por %p50, %p51
      %p54 = scmp.ne.s32.totalorder %s37, %s53
      %p55 = scmp.eq.s32.totalorder %s29, 0
      %p56 = por %p54, %p55
      %s57 = ssub.s32 %s23, %s30
      %p58 = scmp.eq.s32.totalorder %s57, 0
      %s60 = sadd.s32 %s59, 1
      %s61 = scalar_select %p58, %s59, %s60
      %p64 = pneg %p58
      %p65 = scmp.eq.s32.totalorder %s23, 1
      %p66 = por %p64, %p65
      %p67 = scmp.ne.s32.totalorder %s59, %s62
      %p68 = scmp.eq.s32.totalorder %s23, 0
      %p69 = por %p67, %p68
      %p70 = scmp.ne.s32.totalorder %s59, %s62
      %p71 = scmp.eq.s32.totalorder %s28, 1
      %p72 = por %p70, %p71
      %p73 = scmp.ne.s32.totalorder %s62, %s63
      %p74 = scmp.eq.s32.totalorder %s28, 0
      %p75 = por %p73, %p74
      %p76 = scmp.ne.s32.totalorder %s62, %s63
      %p77 = scmp.eq.s32.totalorder %s29, 1
      %p78 = por %p76, %p77
      %p80 = scmp.ne.s32.totalorder %s63, %s79
      %p81 = scmp.eq.s32.totalorder %s29, 0
      %p82 = por %p80, %p81
      %s83 = ssub.s32 %s23, %s30
      %p84 = scmp.eq.s32.totalorder %s83, 0
      %s86 = sadd.s32 %s85, 1
      %s87 = scalar_select %p84, %s85, %s86
      %p90 = pneg %p84
      %p91 = scmp.eq.s32.totalorder %s23, 1
      %p92 = por %p90, %p91
      %p93 = scmp.ne.s32.totalorder %s85, %s88
      %p94 = scmp.eq.s32.totalorder %s23, 0
      %p95 = por %p93, %p94
      %p96 = scmp.ne.s32.totalorder %s85, %s88
      %p97 = scmp.eq.s32.totalorder %s28, 1
      %p98 = por %p96, %p97
      %p99 = scmp.ne.s32.totalorder %s88, %s89
      %p100 = scmp.eq.s32.totalorder %s28, 0
      %p101 = por %p99, %p100
      %p102 = scmp.ne.s32.totalorder %s88, %s89
      %p103 = scmp.eq.s32.totalorder %s29, 1
      %p104 = por %p102, %p103
      %p106 = scmp.ne.s32.totalorder %s89, %s105
      %p107 = scmp.eq.s32.totalorder %s29, 0
      %p108 = por %p106, %p107
      %s109 = ssub.s32 %s23, %s30
      %p110 = scmp.eq.s32.totalorder %s109, 0
      %s112 = sadd.s32 %s111, 1
      %s113 = scalar_select %p110, %s111, %s112
      %p116 = pneg %p110
      %p117 = scmp.eq.s32.totalorder %s23, 1
      %p118 = por %p116, %p117
      %p119 = scmp.ne.s32.totalorder %s111, %s114
      %p120 = scmp.eq.s32.totalorder %s23, 0
      %p121 = por %p119, %p120
      %p122 = scmp.ne.s32.totalorder %s111, %s114
      %p123 = scmp.eq.s32.totalorder %s28, 1
      %p124 = por %p122, %p123
      %p125 = scmp.ne.s32.totalorder %s114, %s115
      %p126 = scmp.eq.s32.totalorder %s28, 0
      %p127 = por %p125, %p126
      %p128 = scmp.ne.s32.totalorder %s114, %s115
      %p129 = scmp.eq.s32.totalorder %s29, 1
      %p130 = por %p128, %p129
      %p132 = scmp.ne.s32.totalorder %s115, %s131
      %p133 = scmp.eq.s32.totalorder %s29, 0
      %p134 = por %p132, %p133
      %s135 = ssub.s32 %s23, %s30
      %p136 = scmp.eq.s32.totalorder %s135, 0
      %s138 = sadd.s32 %s137, 1
      %s139 = scalar_select %p136, %s137, %s138
      %p142 = pneg %p136
      %p143 = scmp.eq.s32.totalorder %s23, 1
      %p144 = por %p142, %p143
      %p145 = scmp.ne.s32.totalorder %s137, %s140
      %p146 = scmp.eq.s32.totalorder %s23, 0
      %p147 = por %p145, %p146
      %p148 = scmp.ne.s32.totalorder %s137, %s140
      %p149 = scmp.eq.s32.totalorder %s28, 1
      %p150 = por %p148, %p149
      %p151 = scmp.ne.s32.totalorder %s140, %s141
      %p152 = scmp.eq.s32.totalorder %s28, 0
      %p153 = por %p151, %p152
      %p154 = scmp.ne.s32.totalorder %s140, %s141
      %p155 = scmp.eq.s32.totalorder %s29, 1
      %p156 = por %p154, %p155
      %p158 = scmp.ne.s32.totalorder %s141, %s157
      %p159 = scmp.eq.s32.totalorder %s29, 0
      %p160 = por %p158, %p159
      %s161 = ssub.s32 %s23, %s30
      %p162 = scmp.eq.s32.totalorder %s161, 0
      %s164 = sadd.s32 %s163, 1
      %s165 = scalar_select %p162, %s163, %s164
      %p168 = pneg %p162
      %p169 = scmp.eq.s32.totalorder %s23, 1
      %p170 = por %p168, %p169
      %p171 = scmp.ne.s32.totalorder %s163, %s166
      %p172 = scmp.eq.s32.totalorder %s23, 0
      %p173 = por %p171, %p172
      %p174 = scmp.ne.s32.totalorder %s163, %s166
      %p175 = scmp.eq.s32.totalorder %s28, 1
      %p176 = por %p174, %p175
      %p177 = scmp.ne.s32.totalorder %s166, %s167
      %p178 = scmp.eq.s32.totalorder %s28, 0
      %p179 = por %p177, %p178
      %p180 = scmp.ne.s32.totalorder %s166, %s167
      %p181 = scmp.eq.s32.totalorder %s29, 1
      %p182 = por %p180, %p181
      %p184 = scmp.ne.s32.totalorder %s167, %s183
      %p185 = scmp.eq.s32.totalorder %s29, 0
      %p186 = por %p184, %p185
      %s188 = sadd.s32 %s187, 1
      %p191 = scmp.eq.s32.totalorder %s23, 1
      %p192 = scmp.ne.s32.totalorder %s187, %s189
      %p193 = scmp.eq.s32.totalorder %s23, 0
      %p194 = por %p192, %p193
      %p195 = scmp.ne.s32.totalorder %s187, %s189
      %p196 = scmp.eq.s32.totalorder %s28, 1
      %p197 = por %p195, %p196
      %p198 = scmp.ne.s32.totalorder %s189, %s190
      %p199 = scmp.eq.s32.totalorder %s28, 0
      %p200 = por %p198, %p199
      %p201 = scmp.ne.s32.totalorder %s189, %s190
      %p202 = scmp.eq.s32.totalorder %s29, 1
      %p203 = por %p201, %p202
      %p205 = scmp.ne.s32.totalorder %s190, %s204
      %p206 = scmp.eq.s32.totalorder %s29, 0
      %p207 = por %p205, %p206
      %s209 = sadd.s32 %s208, 1
      %p212 = scmp.eq.s32.totalorder %s23, 1
      %p213 = scmp.ne.s32.totalorder %s208, %s210
      %p214 = scmp.eq.s32.totalorder %s23, 0
      %p215 = por %p213, %p214
      %p216 = scmp.ne.s32.totalorder %s208, %s210
      %p217 = scmp.eq.s32.totalorder %s28, 1
      %p218 = por %p216, %p217
      %p219 = scmp.ne.s32.totalorder %s210, %s211
      %p220 = scmp.eq.s32.totalorder %s28, 0
      %p221 = por %p219, %p220
      %p222 = scmp.ne.s32.totalorder %s210, %s211
      %p223 = scmp.eq.s32.totalorder %s29, 1
      %p224 = por %p222, %p223
      %p226 = scmp.ne.s32.totalorder %s211, %s225
      %p227 = scmp.eq.s32.totalorder %s29, 0
      %p228 = por %p226, %p227
      %s230 = sadd.s32 %s229, 1
      %p233 = scmp.eq.s32.totalorder %s23, 1
      %p234 = scmp.ne.s32.totalorder %s229, %s231
      %p235 = scmp.eq.s32.totalorder %s23, 0
      %p236 = por %p234, %p235
      %p237 = scmp.ne.s32.totalorder %s229, %s231
      %p238 = scmp.eq.s32.totalorder %s28, 1
      %p239 = por %p237, %p238
      %p240 = scmp.ne.s32.totalorder %s231, %s232
      %p241 = scmp.eq.s32.totalorder %s28, 0
      %p242 = por %p240, %p241
      %p243 = scmp.ne.s32.totalorder %s231, %s232
      %p244 = scmp.eq.s32.totalorder %s29, 1
      %p245 = por %p243, %p244
      %p247 = scmp.ne.s32.totalorder %s232, %s246
      %p248 = scmp.eq.s32.totalorder %s29, 0
      %p249 = por %p247, %p248
      %s251 = sadd.s32 %s250, 1
      %p254 = scmp.eq.s32.totalorder %s23, 1
      %p255 = scmp.ne.s32.totalorder %s250, %s252
      %p256 = scmp.eq.s32.totalorder %s23, 0
      %p257 = por %p255, %p256
      %p258 = scmp.ne.s32.totalorder %s250, %s252
      %p259 = scmp.eq.s32.totalorder %s28, 1
      %p260 = por %p258, %p259
      %p261 = scmp.ne.s32.totalorder %s252, %s253
      %p262 = scmp.eq.s32.totalorder %s28, 0
      %p263 = por %p261, %p262
      %p264 = scmp.ne.s32.totalorder %s252, %s253
      %p265 = scmp.eq.s32.totalorder %s29, 1
      %p266 = por %p264, %p265
      %p268 = scmp.ne.s32.totalorder %s253, %s267
      %p269 = scmp.eq.s32.totalorder %s29, 0
      %p270 = por %p268, %p269
      %s272 = sadd.s32 %s271, 1
      %p275 = scmp.eq.s32.totalorder %s23, 1
      %p276 = scmp.ne.s32.totalorder %s271, %s273
      %p277 = scmp.eq.s32.totalorder %s23, 0
      %p278 = por %p276, %p277
      %p279 = scmp.ne.s32.totalorder %s271, %s273
      %p280 = scmp.eq.s32.totalorder %s28, 1
      %p281 = por %p279, %p280
      %p282 = scmp.ne.s32.totalorder %s273, %s274
      %p283 = scmp.eq.s32.totalorder %s28, 0
      %p284 = por %p282, %p283
      %p285 = scmp.ne.s32.totalorder %s273, %s274
      %p286 = scmp.eq.s32.totalorder %s29, 1
      %p287 = por %p285, %p286
      %p289 = scmp.ne.s32.totalorder %s274, %s288
      %p290 = scmp.eq.s32.totalorder %s29, 0
      %p291 = por %p289, %p290
      %s293 = sadd.s32 %s292, 1
      %p296 = scmp.eq.s32.totalorder %s23, 1
      %p297 = scmp.ne.s32.totalorder %s292, %s294
      %p298 = scmp.eq.s32.totalorder %s23, 0
      %p299 = por %p297, %p298
      %p300 = scmp.ne.s32.totalorder %s292, %s294
      %p301 = scmp.eq.s32.totalorder %s28, 1
      %p302 = por %p300, %p301
      %p303 = scmp.ne.s32.totalorder %s294, %s295
      %p304 = scmp.eq.s32.totalorder %s28, 0
      %p305 = por %p303, %p304
      %p306 = scmp.ne.s32.totalorder %s294, %s295
      %p307 = scmp.eq.s32.totalorder %s29, 1
      %p308 = por %p306, %p307
      %p310 = scmp.ne.s32.totalorder %s295, %s309
      %p311 = scmp.eq.s32.totalorder %s29, 0
      %p312 = por %p310, %p311
      %s314 = sadd.s32 %s313, 1
      %p317 = scmp.eq.s32.totalorder %s23, 1
      %p318 = scmp.ne.s32.totalorder %s313, %s315
      %p319 = scmp.eq.s32.totalorder %s23, 0
      %p320 = por %p318, %p319
      %p321 = scmp.ne.s32.totalorder %s313, %s315
      %p322 = scmp.eq.s32.totalorder %s28, 1
      %p323 = por %p321, %p322
      %p324 = scmp.ne.s32.totalorder %s315, %s316
      %p325 = scmp.eq.s32.totalorder %s28, 0
      %p326 = por %p324, %p325
      %p327 = scmp.ne.s32.totalorder %s315, %s316
      %p328 = scmp.eq.s32.totalorder %s29, 1
      %p329 = por %p327, %p328
      %p331 = scmp.ne.s32.totalorder %s316, %s330
      %p332 = scmp.eq.s32.totalorder %s29, 0
      %p333 = por %p331, %p332
      %s335 = sadd.s32 %s334, 1
      %p338 = scmp.eq.s32.totalorder %s23, 1
      %p339 = scmp.ne.s32.totalorder %s334, %s336
      %p340 = scmp.eq.s32.totalorder %s23, 0
      %p341 = por %p339, %p340
      %p342 = scmp.ne.s32.totalorder %s334, %s336
      %p343 = scmp.eq.s32.totalorder %s28, 1
      %p344 = por %p342, %p343
      %p345 = scmp.ne.s32.totalorder %s336, %s337
      %p346 = scmp.eq.s32.totalorder %s28, 0
      %p347 = por %p345, %p346
      %p348 = scmp.ne.s32.totalorder %s336, %s337
      %p349 = scmp.eq.s32.totalorder %s29, 1
      %p350 = por %p348, %p349
      %p352 = scmp.ne.s32.totalorder %s337, %s351
      %p353 = scmp.eq.s32.totalorder %s29, 0
      %p354 = por %p352, %p353
      %s355 = ssub.s32 %s23, %s30
      %p356 = scmp.eq.s32.totalorder %s355, 0
      %s358 = sadd.s32 %s357, 1
      %s359 = scalar_select %p356, %s357, %s358
      %p362 = pneg %p356
      %p363 = scmp.eq.s32.totalorder %s23, 1
      %p364 = por %p362, %p363
      %p365 = scmp.ne.s32.totalorder %s357, %s360
      %p366 = scmp.eq.s32.totalorder %s23, 0
      %p367 = por %p365, %p366
      %p368 = scmp.ne.s32.totalorder %s357, %s360
      %p369 = scmp.eq.s32.totalorder %s28, 1
      %p370 = por %p368, %p369
      %p371 = scmp.ne.s32.totalorder %s360, %s361
      %p372 = scmp.eq.s32.totalorder %s28, 0
      %p373 = por %p371, %p372
      %p374 = scmp.ne.s32.totalorder %s360, %s361
      %p375 = scmp.eq.s32.totalorder %s29, 1
      %p376 = por %p374, %p375
      %p378 = scmp.ne.s32.totalorder %s361, %s377
      %p379 = scmp.eq.s32.totalorder %s29, 0
      %p380 = por %p378, %p379
      %p381 = scmp.le.s32.totalorder 1, %s23
      %p382 = scmp.lt.s32.totalorder %s23, 3
      %p383 = pnand %p381, %p382
      %p384 = pneg %p383
      // Predicated region
      $region9: #{multihead_attention_forward.1} parent=5 // pred_check
        _
      $region10: #{multihead_attention_forward.1} parent=5 // pred_check_branch
        %386 = sbr.rel (%p383) target = $region12
      $region11: #{multihead_attention_forward.1} parent=5 // pred_region
        %s387 = ssub.s32 %s23, 1
        // Predicated region
        $region13: #{multihead_attention_forward.1} parent=11 // pred_check
          %p388 = pneg %p200
        $region14: #{multihead_attention_forward.1} parent=11 // pred_check_branch
          %390 = sbr.rel (%p388) target = $region16
        $region15: #{multihead_attention_forward.1} parent=11 // pred_region
          %s392 = ssub.s32 1024, 1024
          %393 = vsyncadd [#allocation3], %s392
          %s394 = sshll.u32 [#allocation2], 4
          %s395 = int_to_ptr.vmem [resolvable:$true] %s394
          %400 = dma.hbm_to_vmem [thread:$0]  %s6, 1024, %s395, [#allocation3], 64, 64, 4
        $region16: #{multihead_attention_forward.1} parent=11 // pred_fallthru
          _
        // Predicated region
        $region17: #{multihead_attention_forward.1} parent=11 // pred_check
          %p401 = pneg %p221
        $region18: #{multihead_attention_forward.1} parent=11 // pred_check_branch
          %403 = sbr.rel (%p401) target = $region20
        $region19: #{multihead_attention_forward.1} parent=11 // pred_region
          %s405 = ssub.s32 1024, 1024
          %406 = vsyncadd [#allocation5], %s405
          %s407 = sshll.u32 [#allocation4], 4
          %s408 = int_to_ptr.vmem [resolvable:$true] %s407
          %413 = dma.hbm_to_vmem [thread:$0]  %s7, 1024, %s408, [#allocation5], 64, 64, 4
        $region20: #{multihead_attention_forward.1} parent=11 // pred_fallthru
          _
        // Predicated region
        $region21: #{multihead_attention_forward.1} parent=11 // pred_check
          %p414 = pneg %p242
        $region22: #{multihead_attention_forward.1} parent=11 // pred_check_branch
          %416 = sbr.rel (%p414) target = $region24
        $region23: #{multihead_attention_forward.1} parent=11 // pred_region
          _
        $region24: #{multihead_attention_forward.1} parent=11 // pred_fallthru
          _
        // Predicated region
        $region25: #{multihead_attention_forward.1} parent=11 // pred_check
          %p417 = pneg %p263
        $region26: #{multihead_attention_forward.1} parent=11 // pred_check_branch
          %419 = sbr.rel (%p417) target = $region28
        $region27: #{multihead_attention_forward.1} parent=11 // pred_region
          %s421 = ssub.s32 64, 64
          %422 = vsyncadd [#allocation5], %s421
          %s423 = sshll.u32 [#allocation6], 4
          %s424 = int_to_ptr.vmem [resolvable:$true] %s423
          %429 = dma.hbm_to_vmem [thread:$0]  %s9, 64, %s424, [#allocation5], 16, 16, 1
        $region28: #{multihead_attention_forward.1} parent=11 // pred_fallthru
          _
        // Predicated region
        $region29: #{multihead_attention_forward.1} parent=11 // pred_check
          %p430 = pneg %p284
        $region30: #{multihead_attention_forward.1} parent=11 // pred_check_branch
          %432 = sbr.rel (%p430) target = $region32
        $region31: #{multihead_attention_forward.1} parent=11 // pred_region
          %s434 = ssub.s32 64, 64
          %435 = vsyncadd [#allocation8], %s434
          %s436 = sshll.u32 [#allocation7], 4
          %s437 = int_to_ptr.vmem [resolvable:$true] %s436
          %442 = dma.hbm_to_vmem [thread:$0]  %s10, 64, %s437, [#allocation8], 16, 16, 1
        $region32: #{multihead_attention_forward.1} parent=11 // pred_fallthru
          _
        // Predicated region
        $region33: #{multihead_attention_forward.1} parent=11 // pred_check
          %p443 = pneg %p305
        $region34: #{multihead_attention_forward.1} parent=11 // pred_check_branch
          %445 = sbr.rel (%p443) target = $region36
        $region35: #{multihead_attention_forward.1} parent=11 // pred_region
          %s447 = ssub.s32 64, 64
          %448 = vsyncadd [#allocation8], %s447
          %s449 = sshll.u32 [#allocation9], 4
          %s450 = int_to_ptr.vmem [resolvable:$true] %s449
          %455 = dma.hbm_to_vmem [thread:$0]  %s11, 64, %s450, [#allocation8], 16, 16, 1
        $region36: #{multihead_attention_forward.1} parent=11 // pred_fallthru
          _
        // Predicated region
        $region37: #{multihead_attention_forward.1} parent=11 // pred_check
          %p456 = pneg %p326
        $region38: #{multihead_attention_forward.1} parent=11 // pred_check_branch
          %458 = sbr.rel (%p456) target = $region40
        $region39: #{multihead_attention_forward.1} parent=11 // pred_region
          _
        $region40: #{multihead_attention_forward.1} parent=11 // pred_fallthru
          _
        // Predicated region
        $region41: #{multihead_attention_forward.1} parent=11 // pred_check
          %p459 = pneg %p347
        $region42: #{multihead_attention_forward.1} parent=11 // pred_check_branch
          %461 = sbr.rel (%p459) target = $region44
        $region43: #{multihead_attention_forward.1} parent=11 // pred_region
          _
        $region44: #{multihead_attention_forward.1} parent=11 // pred_fallthru
          _
      $region12: #{multihead_attention_forward.1} parent=5 // pred_fallthru
        _
      %p462 = scmp.lt.s32.totalorder %s23, 2
      // Predicated region
      $region45: #{multihead_attention_forward.1} parent=5 // pred_check
        %p463 = pneg %p462
      $region46: #{multihead_attention_forward.1} parent=5 // pred_check_branch
        %465 = sbr.rel (%p463) target = $region48
      $region47: #{multihead_attention_forward.1} parent=5 // pred_region
        // Predicated region
        $region49: #{multihead_attention_forward.1} parent=47 // pred_check
          %p466 = pneg %p43
        $region50: #{multihead_attention_forward.1} parent=47 // pred_check_branch
          %468 = sbr.rel (%p466) target = $region52
        $region51: #{multihead_attention_forward.1} parent=47 // pred_region
          %p469 = scmp.lt.s32.totalorder %s23, 1
          %s470 = scalar_select %p469, %s23, 1
          %s471 = smul.addr %s470, 8
          %s472 = scalar_lea.vmem %s0, %s471
        $region52: #{multihead_attention_forward.1} parent=47 // pred_fallthru
          _
        // Predicated region
        $region53: #{multihead_attention_forward.1} parent=47 // pred_check
          %p473 = pneg %p69
        $region54: #{multihead_attention_forward.1} parent=47 // pred_check_branch
          %475 = sbr.rel (%p473) target = $region56
        $region55: #{multihead_attention_forward.1} parent=47 // pred_region
          %p476 = scmp.lt.s32.totalorder %s23, 1
          %s477 = scalar_select %p476, %s23, 1
          %s478 = smul.addr %s477, 8
          %s479 = scalar_lea.vmem %s1, %s478
        $region56: #{multihead_attention_forward.1} parent=47 // pred_fallthru
          _
        // Predicated region
        $region57: #{multihead_attention_forward.1} parent=47 // pred_check
          %p480 = pneg %p95
        $region58: #{multihead_attention_forward.1} parent=47 // pred_check_branch
          %482 = sbr.rel (%p480) target = $region60
        $region59: #{multihead_attention_forward.1} parent=47 // pred_region
          %p483 = scmp.lt.s32.totalorder %s23, 1
          %s484 = scalar_select %p483, %s23, 1
          %s485 = smul.addr %s484, 8
          %s486 = scalar_lea.vmem %s2, %s485
        $region60: #{multihead_attention_forward.1} parent=47 // pred_fallthru
          _
        // Predicated region
        $region61: #{multihead_attention_forward.1} parent=47 // pred_check
          %p487 = pneg %p121
        $region62: #{multihead_attention_forward.1} parent=47 // pred_check_branch
          %489 = sbr.rel (%p487) target = $region64
        $region63: #{multihead_attention_forward.1} parent=47 // pred_region
          %p490 = scmp.lt.s32.totalorder %s23, 1
          %s491 = scalar_select %p490, %s23, 1
          %s492 = smul.addr %s491, 8
          %s493 = scalar_lea.vmem %s3, %s492
        $region64: #{multihead_attention_forward.1} parent=47 // pred_fallthru
          _
        // Predicated region
        $region65: #{multihead_attention_forward.1} parent=47 // pred_check
          %p494 = pneg %p147
        $region66: #{multihead_attention_forward.1} parent=47 // pred_check_branch
          %496 = sbr.rel (%p494) target = $region68
        $region67: #{multihead_attention_forward.1} parent=47 // pred_region
          %p497 = scmp.lt.s32.totalorder %s23, 1
          %s498 = scalar_select %p497, %s23, 1
          %s499 = smul.addr %s498, 8
          %s500 = scalar_lea.vmem %s4, %s499
        $region68: #{multihead_attention_forward.1} parent=47 // pred_fallthru
          _
        // Predicated region
        $region69: #{multihead_attention_forward.1} parent=47 // pred_check
          %p501 = pneg %p173
        $region70: #{multihead_attention_forward.1} parent=47 // pred_check_branch
          %503 = sbr.rel (%p501) target = $region72
        $region71: #{multihead_attention_forward.1} parent=47 // pred_region
          %p504 = scmp.lt.s32.totalorder %s23, 1
          %s505 = scalar_select %p504, %s23, 1
          %s506 = smul.addr %s505, 8
          %s507 = scalar_lea.vmem %s5, %s506
        $region72: #{multihead_attention_forward.1} parent=47 // pred_fallthru
          _
      $region48: #{multihead_attention_forward.1} parent=5 // pred_fallthru
        _
      %p508 = scmp.le.s32.totalorder 1, %s23
      %p509 = scmp.lt.s32.totalorder %s23, 3
      %p510 = pnand %p508, %p509
      %p511 = pneg %p510
      // Predicated region
      $region73: #{multihead_attention_forward.1} parent=5 // pred_check
        _
      $region74: #{multihead_attention_forward.1} parent=5 // pred_check_branch
        %513 = sbr.rel (%p510) target = $region76
      $region75: #{multihead_attention_forward.1} parent=5 // pred_region
        %s514 = ssub.s32 %s23, 1
        // Predicated region
        $region77: #{multihead_attention_forward.1} parent=75 // pred_check
          %p515 = pneg %p200
        $region78: #{multihead_attention_forward.1} parent=75 // pred_check_branch
          %517 = sbr.rel (%p515) target = $region80
        $region79: #{multihead_attention_forward.1} parent=75 // pred_region
          %518 = dma.done [#allocation3], 1024
        $region80: #{multihead_attention_forward.1} parent=75 // pred_fallthru
          _
        // Predicated region
        $region81: #{multihead_attention_forward.1} parent=75 // pred_check
          %p519 = pneg %p221
        $region82: #{multihead_attention_forward.1} parent=75 // pred_check_branch
          %521 = sbr.rel (%p519) target = $region84
        $region83: #{multihead_attention_forward.1} parent=75 // pred_region
          %522 = dma.done [#allocation5], 1024
        $region84: #{multihead_attention_forward.1} parent=75 // pred_fallthru
          _
        // Predicated region
        $region85: #{multihead_attention_forward.1} parent=75 // pred_check
          %p523 = pneg %p263
        $region86: #{multihead_attention_forward.1} parent=75 // pred_check_branch
          %525 = sbr.rel (%p523) target = $region88
        $region87: #{multihead_attention_forward.1} parent=75 // pred_region
          %526 = dma.done [#allocation5], 64
        $region88: #{multihead_attention_forward.1} parent=75 // pred_fallthru
          _
        // Predicated region
        $region89: #{multihead_attention_forward.1} parent=75 // pred_check
          %p527 = pneg %p284
        $region90: #{multihead_attention_forward.1} parent=75 // pred_check_branch
          %529 = sbr.rel (%p527) target = $region92
        $region91: #{multihead_attention_forward.1} parent=75 // pred_region
          %530 = dma.done [#allocation8], 64
        $region92: #{multihead_attention_forward.1} parent=75 // pred_fallthru
          _
        // Predicated region
        $region93: #{multihead_attention_forward.1} parent=75 // pred_check
          %p531 = pneg %p305
        $region94: #{multihead_attention_forward.1} parent=75 // pred_check_branch
          %533 = sbr.rel (%p531) target = $region96
        $region95: #{multihead_attention_forward.1} parent=75 // pred_region
          %534 = dma.done [#allocation8], 64
        $region96: #{multihead_attention_forward.1} parent=75 // pred_fallthru
          _
        %p535 = scmp.lt.s32.totalorder %s28, 1
        %s536 = scalar_select %p535, %s28, 1
        %s537 = smul.addr %s536, 8
        %s538 = scalar_lea.vmem %s0, %s537
        %p539 = pneg %p49
        %p540 = pneg %p46
        %p541 = scmp.lt.s32.totalorder %s28, 1
        %s542 = scalar_select %p541, %s28, 1
        %s543 = smul.addr %s542, 8
        %s544 = scalar_lea.vmem %s1, %s543
        %p545 = pneg %p75
        %p546 = pneg %p72
        %p547 = scmp.lt.s32.totalorder %s28, 1
        %s548 = scalar_select %p547, %s28, 1
        %s549 = smul.addr %s548, 8
        %s550 = scalar_lea.vmem %s2, %s549
        %p551 = pneg %p101
        %p552 = pneg %p98
        %p553 = scmp.lt.s32.totalorder %s28, 1
        %s554 = scalar_select %p553, %s28, 1
        %s555 = smul.addr %s554, 8
        %s556 = scalar_lea.vmem %s3, %s555
        %p557 = pneg %p127
        %p558 = pneg %p124
        %p559 = scmp.lt.s32.totalorder %s28, 1
        %s560 = scalar_select %p559, %s28, 1
        %s561 = smul.addr %s560, 8
        %s562 = scalar_lea.vmem %s4, %s561
        %p563 = pneg %p153
        %p564 = pneg %p150
        %p565 = scmp.lt.s32.totalorder %s28, 1
        %s566 = scalar_select %p565, %s28, 1
        %s567 = smul.addr %s566, 8
        %s568 = scalar_lea.vmem %s5, %s567
        %p569 = pneg %p179
        %p570 = pneg %p176
        %p571 = pneg %p200
        %p572 = pneg %p197
        %p573 = pneg %p221
        %p574 = pneg %p218
        %p575 = pneg %p242
        %p576 = pneg %p239
        %p577 = pneg %p263
        %p578 = pneg %p260
        %p579 = pneg %p284
        %p580 = pneg %p281
        %p581 = pneg %p305
        %p582 = pneg %p302
        %p583 = pneg %p326
        %p584 = pneg %p323
        %p585 = pneg %p347
        %p586 = pneg %p344
        %p587 = pneg %p373
        %p588 = pneg %p370
        %p589 = scmp.lt.s32.totalorder %s28, 1
        %s590 = scalar_select %p589, %s28, 1
        %s591 = smul.addr %s590, 8
        %s592 = scalar_lea.vmem %s14, %s591
        %p593 = scmp.lt.s32.totalorder %s28, 1
        %s594 = scalar_select %p593, %s28, 1
        %s595 = smul.addr %s594, 8
        %s596 = scalar_lea.vmem %s0, %s595
        %p597 = scmp.lt.s32.totalorder %s28, 1
        %s598 = scalar_select %p597, %s28, 1
        %s599 = smul.addr %s598, 8
        %s600 = scalar_lea.vmem %s1, %s599
        %p601 = scmp.lt.s32.totalorder %s28, 1
        %s602 = scalar_select %p601, %s28, 1
        %s603 = smul.addr %s602, 8
        %s604 = scalar_lea.vmem %s2, %s603
        %p605 = scmp.lt.s32.totalorder %s28, 1
        %s606 = scalar_select %p605, %s28, 1
        %s607 = smul.addr %s606, 8
        %s608 = scalar_lea.vmem %s3, %s607
        %p609 = scmp.lt.s32.totalorder %s28, 1
        %s610 = scalar_select %p609, %s28, 1
        %s611 = smul.addr %s610, 8
        %s612 = scalar_lea.vmem %s4, %s611
        %p613 = scmp.lt.s32.totalorder %s28, 1
        %s614 = scalar_select %p613, %s28, 1
        %s615 = smul.addr %s614, 8
        %s616 = scalar_lea.vmem %s5, %s615
        %p617 = scmp.lt.s32.totalorder %s28, 1
        %s618 = scalar_select %p617, %s28, 1
        %s619 = smul.addr %s618, 8
        %s620 = scalar_lea.vmem %s14, %s619
        %v622 = vld [vmem:[%s596] sm:$0xff]
        %v623 = vld [vmem:[%s600] sm:$0xff]
        %v624 = vadd.f32 %v622, %v623
        %v625 = vld [vmem:[%s604] sm:$0xff]
        %v626 = vld [vmem:[%s608] sm:$0xff]
        %v627 = vadd.f32 %v625, %v626
        %v628 = vld [vmem:[%s612] sm:$0xff]
        %v629 = vpack.c.bf16 %v624, %v624
        %v630 = vpack.c.bf16 %v627, %v627
        %v631 = vpack.c.bf16 %v628, %v628
        %v632 = vld [vmem:[#allocation2] sm:$0xf]
        %v633 = vld [vmem:[#allocation2 + $0x4] sm:$0xf]
        %v634 = vld [vmem:[#allocation2 + $0x8] sm:$0xf]
        %v635 = vld [vmem:[#allocation2 + $0xc] sm:$0xf]
        %v636 = vld [vmem:[#allocation2 + $0x10] sm:$0xf]
        %v637 = vld [vmem:[#allocation2 + $0x14] sm:$0xf]
        %v638 = vld [vmem:[#allocation2 + $0x18] sm:$0xf]
        %v639 = vld [vmem:[#allocation2 + $0x1c] sm:$0xf]
        %v640 = vld [vmem:[#allocation2 + $0x20] sm:$0xf]
        %v641 = vld [vmem:[#allocation2 + $0x24] sm:$0xf]
        %v642 = vld [vmem:[#allocation2 + $0x28] sm:$0xf]
        %v643 = vld [vmem:[#allocation2 + $0x2c] sm:$0xf]
        %v644 = vld [vmem:[#allocation2 + $0x30] sm:$0xf]
        %v645 = vld [vmem:[#allocation2 + $0x34] sm:$0xf]
        %v646 = vld [vmem:[#allocation2 + $0x38] sm:$0xf]
        %v647 = vld [vmem:[#allocation2 + $0x3c] sm:$0xf]
        %v648 = vld [vmem:[#allocation6] sm:$0x1]
        %v649 = vld [vmem:[#allocation6 + $0x1] sm:$0x1]
        %v650 = vld [vmem:[#allocation6 + $0x2] sm:$0x1]
        %v651 = vld [vmem:[#allocation6 + $0x3] sm:$0x1]
        %v656 = vlaneseq
        %v657 = vshrl.u32 %v656, 7
        %v658 = vsub.s32 0, %v657
        %v659 = vrot.slane %v648, %v658
        %v660 = vlaneseq
        %v661 = vshrl.u32 %v660, 7
        %v662 = vsub.s32 0, %v661
        %v663 = vrot.slane %v649, %v662
        %v664 = vlaneseq
        %v665 = vshrl.u32 %v664, 7
        %v666 = vsub.s32 0, %v665
        %v667 = vrot.slane %v650, %v666
        %v668 = vlaneseq
        %v669 = vshrl.u32 %v668, 7
        %v670 = vsub.s32 0, %v669
        %v671 = vrot.slane %v651, %v670
        %v680 = vunpack.c.l.b16 %v632
        %v681 = vunpack.c.l.b16 %v633
        %v682 = vunpack.c.l.b16 %v634
        %v683 = vunpack.c.l.b16 %v635
        %v684 = vpack.c.b16 %v681, %v680
        %v685 = vpack.c.b16 %v683, %v682
        %vm688 = vcmask 261120
        %v690 = vsel %vm688, %v629, 0
        %692 = vmatprep.subr.bf16.mxu0 0
        %693 = vmatpush1.bf16.msra.mxu0 0
        %694 = vmatprep.subr.bf16.mxu0 0
        %695 = vmatpush1.bf16.msra.mxu0 0
        %696 = vmatprep.subr.bf16.mxu0 0
        %697 = vmatpush1.bf16.msra.mxu0 0
        %698 = vmatprep.subr.bf16.mxu0 0
        %699 = vmatpush1.bf16.msra.mxu0 0
        %700 = vmatprep.subr.bf16.mxu0 0
        %701 = vmatpush1.bf16.msra.mxu0 0
        %702 = vmatprep.subr.bf16.mxu0 0
        %703 = vmatpush1.bf16.msra.mxu0 0
        %704 = vmatprep.subr.bf16.mxu0 0
        %705 = vmatpush1.bf16.msra.mxu0 %v685
        %706 = vmatprep.subr.bf16.mxu0 0
        %707 = vmatpush1.bf16.msra.mxu0 %v684
        %708 = vmatprep.subr.bf16.mxu0 0
        %709 = vmatpush2.bf16.msra.mxu0 0
        %710 = vmatprep.subr.bf16.mxu0 0
        %711 = vmatpush2.bf16.msra.mxu0 0
        %712 = vmatprep.subr.bf16.mxu0 0
        %713 = vmatpush2.bf16.msra.mxu0 0
        %714 = vmatprep.subr.bf16.mxu0 0
        %715 = vmatpush2.bf16.msra.mxu0 0
        %716 = vmatprep.subr.bf16.mxu0 0
        %717 = vmatpush2.bf16.msra.mxu0 0
        %718 = vmatprep.subr.bf16.mxu0 0
        %719 = vmatpush2.bf16.msra.mxu0 0
        %720 = vmatprep.subr.bf16.mxu0 0
        %721 = vmatpush2.bf16.msra.mxu0 0
        %722 = vmatprep.subr.bf16.mxu0 0
        %723 = vmatpush2.bf16.msra.mxu0 0
        %724 = vmatprep.mubr.bf16.mxu0 0
        %725 = vmatmul.mubr.bf16.gmra.mxu0 %v690
        %v726 = vpop.f32.mrf.mxu0
        %v727 = vadd.f32 %v659, %v726
        %v728 = vpop.f32.mrf.mxu0
        %v729 = vpop.f32.mrf.mxu0
        %v730 = vpop.f32.mrf.mxu0
        %731 = vdwg.mxu0
        %v736 = vunpack.c.l.b16 %v636
        %v737 = vunpack.c.l.b16 %v637
        %v738 = vunpack.c.l.b16 %v638
        %v739 = vunpack.c.l.b16 %v639
        %v740 = vpack.c.b16 %v737, %v736
        %v741 = vpack.c.b16 %v739, %v738
        %744 = vmatprep.subr.bf16.mxu0 0
        %745 = vmatpush1.bf16.msra.mxu0 0
        %746 = vmatprep.subr.bf16.mxu0 0
        %747 = vmatpush1.bf16.msra.mxu0 0
        %748 = vmatprep.subr.bf16.mxu0 0
        %749 = vmatpush1.bf16.msra.mxu0 0
        %750 = vmatprep.subr.bf16.mxu0 0
        %751 = vmatpush1.bf16.msra.mxu0 0
        %752 = vmatprep.subr.bf16.mxu0 0
        %753 = vmatpush1.bf16.msra.mxu0 0
        %754 = vmatprep.subr.bf16.mxu0 0
        %755 = vmatpush1.bf16.msra.mxu0 0
        %756 = vmatprep.subr.bf16.mxu0 0
        %757 = vmatpush1.bf16.msra.mxu0 %v741
        %758 = vmatprep.subr.bf16.mxu0 0
        %759 = vmatpush1.bf16.msra.mxu0 %v740
        %760 = vmatprep.subr.bf16.mxu0 0
        %761 = vmatpush2.bf16.msra.mxu0 0
        %762 = vmatprep.subr.bf16.mxu0 0
        %763 = vmatpush2.bf16.msra.mxu0 0
        %764 = vmatprep.subr.bf16.mxu0 0
        %765 = vmatpush2.bf16.msra.mxu0 0
        %766 = vmatprep.subr.bf16.mxu0 0
        %767 = vmatpush2.bf16.msra.mxu0 0
        %768 = vmatprep.subr.bf16.mxu0 0
        %769 = vmatpush2.bf16.msra.mxu0 0
        %770 = vmatprep.subr.bf16.mxu0 0
        %771 = vmatpush2.bf16.msra.mxu0 0
        %772 = vmatprep.subr.bf16.mxu0 0
        %773 = vmatpush2.bf16.msra.mxu0 0
        %774 = vmatprep.subr.bf16.mxu0 0
        %775 = vmatpush2.bf16.msra.mxu0 0
        %776 = vmatprep.mubr.bf16.mxu0 0
        %777 = vmatmul.mubr.bf16.gmra.mxu0 %v690
        %v778 = vpop.f32.mrf.mxu0
        %v779 = vadd.f32 %v663, %v778
        %v780 = vpop.f32.mrf.mxu0
        %v781 = vpop.f32.mrf.mxu0
        %v782 = vpop.f32.mrf.mxu0
        %783 = vdwg.mxu0
        %v788 = vunpack.c.l.b16 %v640
        %v789 = vunpack.c.l.b16 %v641
        %v790 = vunpack.c.l.b16 %v642
        %v791 = vunpack.c.l.b16 %v643
        %v792 = vpack.c.b16 %v789, %v788
        %v793 = vpack.c.b16 %v791, %v790
        %796 = vmatprep.subr.bf16.mxu0 0
        %797 = vmatpush1.bf16.msra.mxu0 0
        %798 = vmatprep.subr.bf16.mxu0 0
        %799 = vmatpush1.bf16.msra.mxu0 0
        %800 = vmatprep.subr.bf16.mxu0 0
        %801 = vmatpush1.bf16.msra.mxu0 0
        %802 = vmatprep.subr.bf16.mxu0 0
        %803 = vmatpush1.bf16.msra.mxu0 0
        %804 = vmatprep.subr.bf16.mxu0 0
        %805 = vmatpush1.bf16.msra.mxu0 0
        %806 = vmatprep.subr.bf16.mxu0 0
        %807 = vmatpush1.bf16.msra.mxu0 0
        %808 = vmatprep.subr.bf16.mxu0 0
        %809 = vmatpush1.bf16.msra.mxu0 %v793
        %810 = vmatprep.subr.bf16.mxu0 0
        %811 = vmatpush1.bf16.msra.mxu0 %v792
        %812 = vmatprep.subr.bf16.mxu0 0
        %813 = vmatpush2.bf16.msra.mxu0 0
        %814 = vmatprep.subr.bf16.mxu0 0
        %815 = vmatpush2.bf16.msra.mxu0 0
        %816 = vmatprep.subr.bf16.mxu0 0
        %817 = vmatpush2.bf16.msra.mxu0 0
        %818 = vmatprep.subr.bf16.mxu0 0
        %819 = vmatpush2.bf16.msra.mxu0 0
        %820 = vmatprep.subr.bf16.mxu0 0
        %821 = vmatpush2.bf16.msra.mxu0 0
        %822 = vmatprep.subr.bf16.mxu0 0
        %823 = vmatpush2.bf16.msra.mxu0 0
        %824 = vmatprep.subr.bf16.mxu0 0
        %825 = vmatpush2.bf16.msra.mxu0 0
        %826 = vmatprep.subr.bf16.mxu0 0
        %827 = vmatpush2.bf16.msra.mxu0 0
        %828 = vmatprep.mubr.bf16.mxu0 0
        %829 = vmatmul.mubr.bf16.gmra.mxu0 %v690
        %v830 = vpop.f32.mrf.mxu0
        %v831 = vadd.f32 %v667, %v830
        %v832 = vpop.f32.mrf.mxu0
        %v833 = vpop.f32.mrf.mxu0
        %v834 = vpop.f32.mrf.mxu0
        %835 = vdwg.mxu0
        %v840 = vunpack.c.l.b16 %v644
        %v841 = vunpack.c.l.b16 %v645
        %v842 = vunpack.c.l.b16 %v646
        %v843 = vunpack.c.l.b16 %v647
        %v844 = vpack.c.b16 %v841, %v840
        %v845 = vpack.c.b16 %v843, %v842
        %848 = vmatprep.subr.bf16.mxu0 0
        %849 = vmatpush1.bf16.msra.mxu0 0
        %850 = vmatprep.subr.bf16.mxu0 0
        %851 = vmatpush1.bf16.msra.mxu0 0
        %852 = vmatprep.subr.bf16.mxu0 0
        %853 = vmatpush1.bf16.msra.mxu0 0
        %854 = vmatprep.subr.bf16.mxu0 0
        %855 = vmatpush1.bf16.msra.mxu0 0
        %856 = vmatprep.subr.bf16.mxu0 0
        %857 = vmatpush1.bf16.msra.mxu0 0
        %858 = vmatprep.subr.bf16.mxu0 0
        %859 = vmatpush1.bf16.msra.mxu0 0
        %860 = vmatprep.subr.bf16.mxu0 0
        %861 = vmatpush1.bf16.msra.mxu0 %v845
        %862 = vmatprep.subr.bf16.mxu0 0
        %863 = vmatpush1.bf16.msra.mxu0 %v844
        %864 = vmatprep.subr.bf16.mxu0 0
        %865 = vmatpush2.bf16.msra.mxu0 0
        %866 = vmatprep.subr.bf16.mxu0 0
        %867 = vmatpush2.bf16.msra.mxu0 0
        %868 = vmatprep.subr.bf16.mxu0 0
        %869 = vmatpush2.bf16.msra.mxu0 0
        %870 = vmatprep.subr.bf16.mxu0 0
        %871 = vmatpush2.bf16.msra.mxu0 0
        %872 = vmatprep.subr.bf16.mxu0 0
        %873 = vmatpush2.bf16.msra.mxu0 0
        %874 = vmatprep.subr.bf16.mxu0 0
        %875 = vmatpush2.bf16.msra.mxu0 0
        %876 = vmatprep.subr.bf16.mxu0 0
        %877 = vmatpush2.bf16.msra.mxu0 0
        %878 = vmatprep.subr.bf16.mxu0 0
        %879 = vmatpush2.bf16.msra.mxu0 0
        %880 = vmatprep.mubr.bf16.mxu0 0
        %881 = vmatmul.mubr.bf16.gmra.mxu0 %v690
        %v882 = vpop.f32.mrf.mxu0
        %v883 = vadd.f32 %v671, %v882
        %v884 = vpop.f32.mrf.mxu0
        %v885 = vpop.f32.mrf.mxu0
        %v886 = vpop.f32.mrf.mxu0
        %887 = vdwg.mxu0
        %v888 = vld [vmem:[#allocation4] sm:$0xf]
        %v889 = vld [vmem:[#allocation4 + $0x4] sm:$0xf]
        %v890 = vld [vmem:[#allocation4 + $0x8] sm:$0xf]
        %v891 = vld [vmem:[#allocation4 + $0xc] sm:$0xf]
        %v892 = vld [vmem:[#allocation4 + $0x10] sm:$0xf]
        %v893 = vld [vmem:[#allocation4 + $0x14] sm:$0xf]
        %v894 = vld [vmem:[#allocation4 + $0x18] sm:$0xf]
        %v895 = vld [vmem:[#allocation4 + $0x1c] sm:$0xf]
        %v896 = vld [vmem:[#allocation4 + $0x20] sm:$0xf]
        %v897 = vld [vmem:[#allocation4 + $0x24] sm:$0xf]
        %v898 = vld [vmem:[#allocation4 + $0x28] sm:$0xf]
        %v899 = vld [vmem:[#allocation4 + $0x2c] sm:$0xf]
        %v900 = vld [vmem:[#allocation4 + $0x30] sm:$0xf]
        %v901 = vld [vmem:[#allocation4 + $0x34] sm:$0xf]
        %v902 = vld [vmem:[#allocation4 + $0x38] sm:$0xf]
        %v903 = vld [vmem:[#allocation4 + $0x3c] sm:$0xf]
        %v904 = vld [vmem:[#allocation7] sm:$0x1]
        %v905 = vld [vmem:[#allocation7 + $0x1] sm:$0x1]
        %v906 = vld [vmem:[#allocation7 + $0x2] sm:$0x1]
        %v907 = vld [vmem:[#allocation7 + $0x3] sm:$0x1]
        %v912 = vlaneseq
        %v913 = vshrl.u32 %v912, 7
        %v914 = vsub.s32 0, %v913
        %v915 = vrot.slane %v904, %v914
        %v916 = vlaneseq
        %v917 = vshrl.u32 %v916, 7
        %v918 = vsub.s32 0, %v917
        %v919 = vrot.slane %v905, %v918
        %v920 = vlaneseq
        %v921 = vshrl.u32 %v920, 7
        %v922 = vsub.s32 0, %v921
        %v923 = vrot.slane %v906, %v922
        %v924 = vlaneseq
        %v925 = vshrl.u32 %v924, 7
        %v926 = vsub.s32 0, %v925
        %v927 = vrot.slane %v907, %v926
        %v936 = vunpack.c.l.b16 %v888
        %v937 = vunpack.c.l.b16 %v889
        %v938 = vunpack.c.l.b16 %v890
        %v939 = vunpack.c.l.b16 %v891
        %v940 = vpack.c.b16 %v937, %v936
        %v941 = vpack.c.b16 %v939, %v938
        %v945 = vsel %vm688, %v630, 0
        %947 = vmatprep.subr.bf16.mxu0 0
        %948 = vmatpush1.bf16.msra.mxu0 0
        %949 = vmatprep.subr.bf16.mxu0 0
        %950 = vmatpush1.bf16.msra.mxu0 0
        %951 = vmatprep.subr.bf16.mxu0 0
        %952 = vmatpush1.bf16.msra.mxu0 0
        %953 = vmatprep.subr.bf16.mxu0 0
        %954 = vmatpush1.bf16.msra.mxu0 0
        %955 = vmatprep.subr.bf16.mxu0 0
        %956 = vmatpush1.bf16.msra.mxu0 0
        %957 = vmatprep.subr.bf16.mxu0 0
        %958 = vmatpush1.bf16.msra.mxu0 0
        %959 = vmatprep.subr.bf16.mxu0 0
        %960 = vmatpush1.bf16.msra.mxu0 %v941
        %961 = vmatprep.subr.bf16.mxu0 0
        %962 = vmatpush1.bf16.msra.mxu0 %v940
        %963 = vmatprep.subr.bf16.mxu0 0
        %964 = vmatpush2.bf16.msra.mxu0 0
        %965 = vmatprep.subr.bf16.mxu0 0
        %966 = vmatpush2.bf16.msra.mxu0 0
        %967 = vmatprep.subr.bf16.mxu0 0
        %968 = vmatpush2.bf16.msra.mxu0 0
        %969 = vmatprep.subr.bf16.mxu0 0
        %970 = vmatpush2.bf16.msra.mxu0 0
        %971 = vmatprep.subr.bf16.mxu0 0
        %972 = vmatpush2.bf16.msra.mxu0 0
        %973 = vmatprep.subr.bf16.mxu0 0
        %974 = vmatpush2.bf16.msra.mxu0 0
        %975 = vmatprep.subr.bf16.mxu0 0
        %976 = vmatpush2.bf16.msra.mxu0 0
        %977 = vmatprep.subr.bf16.mxu0 0
        %978 = vmatpush2.bf16.msra.mxu0 0
        %979 = vmatprep.mubr.bf16.mxu0 0
        %980 = vmatmul.mubr.bf16.gmra.mxu0 %v945
        %v981 = vpop.f32.mrf.mxu0
        %v982 = vadd.f32 %v915, %v981
        %v983 = vpop.f32.mrf.mxu0
        %v984 = vpop.f32.mrf.mxu0
        %v985 = vpop.f32.mrf.mxu0
        %986 = vdwg.mxu0
        %v991 = vunpack.c.l.b16 %v892
        %v992 = vunpack.c.l.b16 %v893
        %v993 = vunpack.c.l.b16 %v894
        %v994 = vunpack.c.l.b16 %v895
        %v995 = vpack.c.b16 %v992, %v991
        %v996 = vpack.c.b16 %v994, %v993
        %999 = vmatprep.subr.bf16.mxu0 0
        %1000 = vmatpush1.bf16.msra.mxu0 0
        %1001 = vmatprep.subr.bf16.mxu0 0
        %1002 = vmatpush1.bf16.msra.mxu0 0
        %1003 = vmatprep.subr.bf16.mxu0 0
        %1004 = vmatpush1.bf16.msra.mxu0 0
        %1005 = vmatprep.subr.bf16.mxu0 0
        %1006 = vmatpush1.bf16.msra.mxu0 0
        %1007 = vmatprep.subr.bf16.mxu0 0
        %1008 = vmatpush1.bf16.msra.mxu0 0
        %1009 = vmatprep.subr.bf16.mxu0 0
        %1010 = vmatpush1.bf16.msra.mxu0 0
        %1011 = vmatprep.subr.bf16.mxu0 0
        %1012 = vmatpush1.bf16.msra.mxu0 %v996
        %1013 = vmatprep.subr.bf16.mxu0 0
        %1014 = vmatpush1.bf16.msra.mxu0 %v995
        %1015 = vmatprep.subr.bf16.mxu0 0
        %1016 = vmatpush2.bf16.msra.mxu0 0
        %1017 = vmatprep.subr.bf16.mxu0 0
        %1018 = vmatpush2.bf16.msra.mxu0 0
        %1019 = vmatprep.subr.bf16.mxu0 0
        %1020 = vmatpush2.bf16.msra.mxu0 0
        %1021 = vmatprep.subr.bf16.mxu0 0
        %1022 = vmatpush2.bf16.msra.mxu0 0
        %1023 = vmatprep.subr.bf16.mxu0 0
        %1024 = vmatpush2.bf16.msra.mxu0 0
        %1025 = vmatprep.subr.bf16.mxu0 0
        %1026 = vmatpush2.bf16.msra.mxu0 0
        %1027 = vmatprep.subr.bf16.mxu0 0
        %1028 = vmatpush2.bf16.msra.mxu0 0
        %1029 = vmatprep.subr.bf16.mxu0 0
        %1030 = vmatpush2.bf16.msra.mxu0 0
        %1031 = vmatprep.mubr.bf16.mxu0 0
        %1032 = vmatmul.mubr.bf16.gmra.mxu0 %v945
        %v1033 = vpop.f32.mrf.mxu0
        %v1034 = vadd.f32 %v919, %v1033
        %v1035 = vpop.f32.mrf.mxu0
        %v1036 = vpop.f32.mrf.mxu0
        %v1037 = vpop.f32.mrf.mxu0
        %1038 = vdwg.mxu0
        %v1043 = vunpack.c.l.b16 %v896
        %v1044 = vunpack.c.l.b16 %v897
        %v1045 = vunpack.c.l.b16 %v898
        %v1046 = vunpack.c.l.b16 %v899
        %v1047 = vpack.c.b16 %v1044, %v1043
        %v1048 = vpack.c.b16 %v1046, %v1045
        %1051 = vmatprep.subr.bf16.mxu0 0
        %1052 = vmatpush1.bf16.msra.mxu0 0
        %1053 = vmatprep.subr.bf16.mxu0 0
        %1054 = vmatpush1.bf16.msra.mxu0 0
        %1055 = vmatprep.subr.bf16.mxu0 0
        %1056 = vmatpush1.bf16.msra.mxu0 0
        %1057 = vmatprep.subr.bf16.mxu0 0
        %1058 = vmatpush1.bf16.msra.mxu0 0
        %1059 = vmatprep.subr.bf16.mxu0 0
        %1060 = vmatpush1.bf16.msra.mxu0 0
        %1061 = vmatprep.subr.bf16.mxu0 0
        %1062 = vmatpush1.bf16.msra.mxu0 0
        %1063 = vmatprep.subr.bf16.mxu0 0
        %1064 = vmatpush1.bf16.msra.mxu0 %v1048
        %1065 = vmatprep.subr.bf16.mxu0 0
        %1066 = vmatpush1.bf16.msra.mxu0 %v1047
        %1067 = vmatprep.subr.bf16.mxu0 0
        %1068 = vmatpush2.bf16.msra.mxu0 0
        %1069 = vmatprep.subr.bf16.mxu0 0
        %1070 = vmatpush2.bf16.msra.mxu0 0
        %1071 = vmatprep.subr.bf16.mxu0 0
        %1072 = vmatpush2.bf16.msra.mxu0 0
        %1073 = vmatprep.subr.bf16.mxu0 0
        %1074 = vmatpush2.bf16.msra.mxu0 0
        %1075 = vmatprep.subr.bf16.mxu0 0
        %1076 = vmatpush2.bf16.msra.mxu0 0
        %1077 = vmatprep.subr.bf16.mxu0 0
        %1078 = vmatpush2.bf16.msra.mxu0 0
        %1079 = vmatprep.subr.bf16.mxu0 0
        %1080 = vmatpush2.bf16.msra.mxu0 0
        %1081 = vmatprep.subr.bf16.mxu0 0
        %1082 = vmatpush2.bf16.msra.mxu0 0
        %1083 = vmatprep.mubr.bf16.mxu0 0
        %1084 = vmatmul.mubr.bf16.gmra.mxu0 %v945
        %v1085 = vpop.f32.mrf.mxu0
        %v1086 = vadd.f32 %v923, %v1085
        %v1087 = vpop.f32.mrf.mxu0
        %v1088 = vpop.f32.mrf.mxu0
        %v1089 = vpop.f32.mrf.mxu0
        %1090 = vdwg.mxu0
        %v1095 = vunpack.c.l.b16 %v900
        %v1096 = vunpack.c.l.b16 %v901
        %v1097 = vunpack.c.l.b16 %v902
        %v1098 = vunpack.c.l.b16 %v903
        %v1099 = vpack.c.b16 %v1096, %v1095
        %v1100 = vpack.c.b16 %v1098, %v1097
        %1103 = vmatprep.subr.bf16.mxu0 0
        %1104 = vmatpush1.bf16.msra.mxu0 0
        %1105 = vmatprep.subr.bf16.mxu0 0
        %1106 = vmatpush1.bf16.msra.mxu0 0
        %1107 = vmatprep.subr.bf16.mxu0 0
        %1108 = vmatpush1.bf16.msra.mxu0 0
        %1109 = vmatprep.subr.bf16.mxu0 0
        %1110 = vmatpush1.bf16.msra.mxu0 0
        %1111 = vmatprep.subr.bf16.mxu0 0
        %1112 = vmatpush1.bf16.msra.mxu0 0
        %1113 = vmatprep.subr.bf16.mxu0 0
        %1114 = vmatpush1.bf16.msra.mxu0 0
        %1115 = vmatprep.subr.bf16.mxu0 0
        %1116 = vmatpush1.bf16.msra.mxu0 %v1100
        %1117 = vmatprep.subr.bf16.mxu0 0
        %1118 = vmatpush1.bf16.msra.mxu0 %v1099
        %1119 = vmatprep.subr.bf16.mxu0 0
        %1120 = vmatpush2.bf16.msra.mxu0 0
        %1121 = vmatprep.subr.bf16.mxu0 0
        %1122 = vmatpush2.bf16.msra.mxu0 0
        %1123 = vmatprep.subr.bf16.mxu0 0
        %1124 = vmatpush2.bf16.msra.mxu0 0
        %1125 = vmatprep.subr.bf16.mxu0 0
        %1126 = vmatpush2.bf16.msra.mxu0 0
        %1127 = vmatprep.subr.bf16.mxu0 0
        %1128 = vmatpush2.bf16.msra.mxu0 0
        %1129 = vmatprep.subr.bf16.mxu0 0
        %1130 = vmatpush2.bf16.msra.mxu0 0
        %1131 = vmatprep.subr.bf16.mxu0 0
        %1132 = vmatpush2.bf16.msra.mxu0 0
        %1133 = vmatprep.subr.bf16.mxu0 0
        %1134 = vmatpush2.bf16.msra.mxu0 0
        %1135 = vmatprep.mubr.bf16.mxu0 0
        %1136 = vmatmul.mubr.bf16.gmra.mxu0 %v945
        %v1137 = vpop.f32.mrf.mxu0
        %v1138 = vadd.f32 %v927, %v1137
        %v1139 = vpop.f32.mrf.mxu0
        %v1140 = vpop.f32.mrf.mxu0
        %v1141 = vpop.f32.mrf.mxu0
        %1142 = vdwg.mxu0
        %v1143 = vld [vmem:[%s8] sm:$0xf]
        %v1144 = vld [vmem:[%s8 + $0x4] sm:$0xf]
        %v1145 = vld [vmem:[%s8 + $0x8] sm:$0xf]
        %v1146 = vld [vmem:[%s8 + $0xc] sm:$0xf]
        %v1147 = vld [vmem:[%s8 + $0x10] sm:$0xf]
        %v1148 = vld [vmem:[%s8 + $0x14] sm:$0xf]
        %v1149 = vld [vmem:[%s8 + $0x18] sm:$0xf]
        %v1150 = vld [vmem:[%s8 + $0x1c] sm:$0xf]
        %v1151 = vld [vmem:[%s8 + $0x20] sm:$0xf]
        %v1152 = vld [vmem:[%s8 + $0x24] sm:$0xf]
        %v1153 = vld [vmem:[%s8 + $0x28] sm:$0xf]
        %v1154 = vld [vmem:[%s8 + $0x2c] sm:$0xf]
        %v1155 = vld [vmem:[%s8 + $0x30] sm:$0xf]
        %v1156 = vld [vmem:[%s8 + $0x34] sm:$0xf]
        %v1157 = vld [vmem:[%s8 + $0x38] sm:$0xf]
        %v1158 = vld [vmem:[%s8 + $0x3c] sm:$0xf]
        %v1159 = vld [vmem:[#allocation9] sm:$0x1]
        %v1160 = vld [vmem:[#allocation9 + $0x1] sm:$0x1]
        %v1161 = vld [vmem:[#allocation9 + $0x2] sm:$0x1]
        %v1162 = vld [vmem:[#allocation9 + $0x3] sm:$0x1]
        %v1167 = vlaneseq
        %v1168 = vshrl.u32 %v1167, 7
        %v1169 = vsub.s32 0, %v1168
        %v1170 = vrot.slane %v1159, %v1169
        %v1171 = vlaneseq
        %v1172 = vshrl.u32 %v1171, 7
        %v1173 = vsub.s32 0, %v1172
        %v1174 = vrot.slane %v1160, %v1173
        %v1175 = vlaneseq
        %v1176 = vshrl.u32 %v1175, 7
        %v1177 = vsub.s32 0, %v1176
        %v1178 = vrot.slane %v1161, %v1177
        %v1179 = vlaneseq
        %v1180 = vshrl.u32 %v1179, 7
        %v1181 = vsub.s32 0, %v1180
        %v1182 = vrot.slane %v1162, %v1181
        %v1191 = vunpack.c.l.b16 %v1143
        %v1192 = vunpack.c.l.b16 %v1144
        %v1193 = vunpack.c.l.b16 %v1145
        %v1194 = vunpack.c.l.b16 %v1146
        %v1195 = vpack.c.b16 %v1192, %v1191
        %v1196 = vpack.c.b16 %v1194, %v1193
        %v1200 = vsel %vm688, %v631, 0
        %1202 = vmatprep.subr.bf16.mxu0 0
        %1203 = vmatpush1.bf16.msra.mxu0 0
        %1204 = vmatprep.subr.bf16.mxu0 0
        %1205 = vmatpush1.bf16.msra.mxu0 0
        %1206 = vmatprep.subr.bf16.mxu0 0
        %1207 = vmatpush1.bf16.msra.mxu0 0
        %1208 = vmatprep.subr.bf16.mxu0 0
        %1209 = vmatpush1.bf16.msra.mxu0 0
        %1210 = vmatprep.subr.bf16.mxu0 0
        %1211 = vmatpush1.bf16.msra.mxu0 0
        %1212 = vmatprep.subr.bf16.mxu0 0
        %1213 = vmatpush1.bf16.msra.mxu0 0
        %1214 = vmatprep.subr.bf16.mxu0 0
        %1215 = vmatpush1.bf16.msra.mxu0 %v1196
        %1216 = vmatprep.subr.bf16.mxu0 0
        %1217 = vmatpush1.bf16.msra.mxu0 %v1195
        %1218 = vmatprep.subr.bf16.mxu0 0
        %1219 = vmatpush2.bf16.msra.mxu0 0
        %1220 = vmatprep.subr.bf16.mxu0 0
        %1221 = vmatpush2.bf16.msra.mxu0 0
        %1222 = vmatprep.subr.bf16.mxu0 0
        %1223 = vmatpush2.bf16.msra.mxu0 0
        %1224 = vmatprep.subr.bf16.mxu0 0
        %1225 = vmatpush2.bf16.msra.mxu0 0
        %1226 = vmatprep.subr.bf16.mxu0 0
        %1227 = vmatpush2.bf16.msra.mxu0 0
        %1228 = vmatprep.subr.bf16.mxu0 0
        %1229 = vmatpush2.bf16.msra.mxu0 0
        %1230 = vmatprep.subr.bf16.mxu0 0
        %1231 = vmatpush2.bf16.msra.mxu0 0
        %1232 = vmatprep.subr.bf16.mxu0 0
        %1233 = vmatpush2.bf16.msra.mxu0 0
        %1234 = vmatprep.mubr.bf16.mxu0 0
        %1235 = vmatmul.mubr.bf16.gmra.mxu0 %v1200
        %v1236 = vpop.f32.mrf.mxu0
        %v1237 = vadd.f32 %v1170, %v1236
        %v1238 = vpop.f32.mrf.mxu0
        %v1239 = vpop.f32.mrf.mxu0
        %v1240 = vpop.f32.mrf.mxu0
        %1241 = vdwg.mxu0
        %v1246 = vunpack.c.l.b16 %v1147
        %v1247 = vunpack.c.l.b16 %v1148
        %v1248 = vunpack.c.l.b16 %v1149
        %v1249 = vunpack.c.l.b16 %v1150
        %v1250 = vpack.c.b16 %v1247, %v1246
        %v1251 = vpack.c.b16 %v1249, %v1248
        %1254 = vmatprep.subr.bf16.mxu0 0
        %1255 = vmatpush1.bf16.msra.mxu0 0
        %1256 = vmatprep.subr.bf16.mxu0 0
        %1257 = vmatpush1.bf16.msra.mxu0 0
        %1258 = vmatprep.subr.bf16.mxu0 0
        %1259 = vmatpush1.bf16.msra.mxu0 0
        %1260 = vmatprep.subr.bf16.mxu0 0
        %1261 = vmatpush1.bf16.msra.mxu0 0
        %1262 = vmatprep.subr.bf16.mxu0 0
        %1263 = vmatpush1.bf16.msra.mxu0 0
        %1264 = vmatprep.subr.bf16.mxu0 0
        %1265 = vmatpush1.bf16.msra.mxu0 0
        %1266 = vmatprep.subr.bf16.mxu0 0
        %1267 = vmatpush1.bf16.msra.mxu0 %v1251
        %1268 = vmatprep.subr.bf16.mxu0 0
        %1269 = vmatpush1.bf16.msra.mxu0 %v1250
        %1270 = vmatprep.subr.bf16.mxu0 0
        %1271 = vmatpush2.bf16.msra.mxu0 0
        %1272 = vmatprep.subr.bf16.mxu0 0
        %1273 = vmatpush2.bf16.msra.mxu0 0
        %1274 = vmatprep.subr.bf16.mxu0 0
        %1275 = vmatpush2.bf16.msra.mxu0 0
        %1276 = vmatprep.subr.bf16.mxu0 0
        %1277 = vmatpush2.bf16.msra.mxu0 0
        %1278 = vmatprep.subr.bf16.mxu0 0
        %1279 = vmatpush2.bf16.msra.mxu0 0
        %1280 = vmatprep.subr.bf16.mxu0 0
        %1281 = vmatpush2.bf16.msra.mxu0 0
        %1282 = vmatprep.subr.bf16.mxu0 0
        %1283 = vmatpush2.bf16.msra.mxu0 0
        %1284 = vmatprep.subr.bf16.mxu0 0
        %1285 = vmatpush2.bf16.msra.mxu0 0
        %1286 = vmatprep.mubr.bf16.mxu0 0
        %1287 = vmatmul.mubr.bf16.gmra.mxu0 %v1200
        %v1288 = vpop.f32.mrf.mxu0
        %v1289 = vadd.f32 %v1174, %v1288
        %v1290 = vpop.f32.mrf.mxu0
        %v1291 = vpop.f32.mrf.mxu0
        %v1292 = vpop.f32.mrf.mxu0
        %1293 = vdwg.mxu0
        %v1298 = vunpack.c.l.b16 %v1151
        %v1299 = vunpack.c.l.b16 %v1152
        %v1300 = vunpack.c.l.b16 %v1153
        %v1301 = vunpack.c.l.b16 %v1154
        %v1302 = vpack.c.b16 %v1299, %v1298
        %v1303 = vpack.c.b16 %v1301, %v1300
        %1306 = vmatprep.subr.bf16.mxu0 0
        %1307 = vmatpush1.bf16.msra.mxu0 0
        %1308 = vmatprep.subr.bf16.mxu0 0
        %1309 = vmatpush1.bf16.msra.mxu0 0
        %1310 = vmatprep.subr.bf16.mxu0 0
        %1311 = vmatpush1.bf16.msra.mxu0 0
        %1312 = vmatprep.subr.bf16.mxu0 0
        %1313 = vmatpush1.bf16.msra.mxu0 0
        %1314 = vmatprep.subr.bf16.mxu0 0
        %1315 = vmatpush1.bf16.msra.mxu0 0
        %1316 = vmatprep.subr.bf16.mxu0 0
        %1317 = vmatpush1.bf16.msra.mxu0 0
        %1318 = vmatprep.subr.bf16.mxu0 0
        %1319 = vmatpush1.bf16.msra.mxu0 %v1303
        %1320 = vmatprep.subr.bf16.mxu0 0
        %1321 = vmatpush1.bf16.msra.mxu0 %v1302
        %1322 = vmatprep.subr.bf16.mxu0 0
        %1323 = vmatpush2.bf16.msra.mxu0 0
        %1324 = vmatprep.subr.bf16.mxu0 0
        %1325 = vmatpush2.bf16.msra.mxu0 0
        %1326 = vmatprep.subr.bf16.mxu0 0
        %1327 = vmatpush2.bf16.msra.mxu0 0
        %1328 = vmatprep.subr.bf16.mxu0 0
        %1329 = vmatpush2.bf16.msra.mxu0 0
        %1330 = vmatprep.subr.bf16.mxu0 0
        %1331 = vmatpush2.bf16.msra.mxu0 0
        %1332 = vmatprep.subr.bf16.mxu0 0
        %1333 = vmatpush2.bf16.msra.mxu0 0
        %1334 = vmatprep.subr.bf16.mxu0 0
        %1335 = vmatpush2.bf16.msra.mxu0 0
        %1336 = vmatprep.subr.bf16.mxu0 0
        %1337 = vmatpush2.bf16.msra.mxu0 0
        %1338 = vmatprep.mubr.bf16.mxu0 0
        %1339 = vmatmul.mubr.bf16.gmra.mxu0 %v1200
        %v1340 = vpop.f32.mrf.mxu0
        %v1341 = vadd.f32 %v1178, %v1340
        %v1342 = vpop.f32.mrf.mxu0
        %v1343 = vpop.f32.mrf.mxu0
        %v1344 = vpop.f32.mrf.mxu0
        %1345 = vdwg.mxu0
        %v1350 = vunpack.c.l.b16 %v1155
        %v1351 = vunpack.c.l.b16 %v1156
        %v1352 = vunpack.c.l.b16 %v1157
        %v1353 = vunpack.c.l.b16 %v1158
        %v1354 = vpack.c.b16 %v1351, %v1350
        %v1355 = vpack.c.b16 %v1353, %v1352
        %1358 = vmatprep.subr.bf16.mxu0 0
        %1359 = vmatpush1.bf16.msra.mxu0 0
        %1360 = vmatprep.subr.bf16.mxu0 0
        %1361 = vmatpush1.bf16.msra.mxu0 0
        %1362 = vmatprep.subr.bf16.mxu0 0
        %1363 = vmatpush1.bf16.msra.mxu0 0
        %1364 = vmatprep.subr.bf16.mxu0 0
        %1365 = vmatpush1.bf16.msra.mxu0 0
        %1366 = vmatprep.subr.bf16.mxu0 0
        %1367 = vmatpush1.bf16.msra.mxu0 0
        %1368 = vmatprep.subr.bf16.mxu0 0
        %1369 = vmatpush1.bf16.msra.mxu0 0
        %1370 = vmatprep.subr.bf16.mxu0 0
        %1371 = vmatpush1.bf16.msra.mxu0 %v1355
        %1372 = vmatprep.subr.bf16.mxu0 0
        %1373 = vmatpush1.bf16.msra.mxu0 %v1354
        %1374 = vmatprep.subr.bf16.mxu0 0
        %1375 = vmatpush2.bf16.msra.mxu0 0
        %1376 = vmatprep.subr.bf16.mxu0 0
        %1377 = vmatpush2.bf16.msra.mxu0 0
        %1378 = vmatprep.subr.bf16.mxu0 0
        %1379 = vmatpush2.bf16.msra.mxu0 0
        %1380 = vmatprep.subr.bf16.mxu0 0
        %1381 = vmatpush2.bf16.msra.mxu0 0
        %1382 = vmatprep.subr.bf16.mxu0 0
        %1383 = vmatpush2.bf16.msra.mxu0 0
        %1384 = vmatprep.subr.bf16.mxu0 0
        %1385 = vmatpush2.bf16.msra.mxu0 0
        %1386 = vmatprep.subr.bf16.mxu0 0
        %1387 = vmatpush2.bf16.msra.mxu0 0
        %1388 = vmatprep.subr.bf16.mxu0 0
        %1389 = vmatpush2.bf16.msra.mxu0 0
        %1390 = vmatprep.mubr.bf16.mxu0 0
        %1391 = vmatmul.mubr.bf16.gmra.mxu0 %v1200
        %v1392 = vpop.f32.mrf.mxu0
        %v1393 = vadd.f32 %v1182, %v1392
        %v1394 = vpop.f32.mrf.mxu0
        %v1395 = vpop.f32.mrf.mxu0
        %v1396 = vpop.f32.mrf.mxu0
        %1397 = vdwg.mxu0
        %v1398 = vpack.c.bf16 %v727, %v727
        %v1399 = vpack.c.bf16 %v779, %v779
        %v1400 = vpack.c.bf16 %v831, %v831
        %v1401 = vpack.c.bf16 %v883, %v883
        %v1402 = vpack.c.bf16 %v982, %v982
        %v1403 = vpack.c.bf16 %v1034, %v1034
        %v1404 = vpack.c.bf16 %v1086, %v1086
        %v1405 = vpack.c.bf16 %v1138, %v1138
        %vm1406 = vcmask 64512
        %v1408 = vsel %vm1406, %v1398, 0
        %v1411 = vsel %vm1406, %v1402, 0
        %1413 = vmatprep.subr.bf16.mxu0 0
        %1414 = vmatpush1.bf16.xpose.msra.mxu0 0
        %1415 = vmatprep.subr.bf16.mxu0 0
        %1416 = vmatpush1.bf16.xpose.msra.mxu0 0
        %1417 = vmatprep.subr.bf16.mxu0 0
        %1418 = vmatpush1.bf16.xpose.msra.mxu0 0
        %1419 = vmatprep.subr.bf16.mxu0 0
        %1420 = vmatpush1.bf16.xpose.msra.mxu0 0
        %1421 = vmatprep.subr.bf16.mxu0 0
        %1422 = vmatpush1.bf16.xpose.msra.mxu0 0
        %1423 = vmatprep.subr.bf16.mxu0 0
        %1424 = vmatpush1.bf16.xpose.msra.mxu0 0
        %1425 = vmatprep.subr.bf16.mxu0 0
        %1426 = vmatpush1.bf16.xpose.msra.mxu0 0
        %1427 = vmatprep.subr.bf16.mxu0 0
        %1428 = vmatpush1.bf16.xpose.msra.mxu0 %v1411
        %1429 = vmatprep.subr.bf16.mxu0 0
        %1430 = vmatpush2.bf16.xpose.msra.mxu0 0
        %1431 = vmatprep.subr.bf16.mxu0 0
        %1432 = vmatpush2.bf16.xpose.msra.mxu0 0
        %1433 = vmatprep.subr.bf16.mxu0 0
        %1434 = vmatpush2.bf16.xpose.msra.mxu0 0
        %1435 = vmatprep.subr.bf16.mxu0 0
        %1436 = vmatpush2.bf16.xpose.msra.mxu0 0
        %1437 = vmatprep.subr.bf16.mxu0 0
        %1438 = vmatpush2.bf16.xpose.msra.mxu0 0
        %1439 = vmatprep.subr.bf16.mxu0 0
        %1440 = vmatpush2.bf16.xpose.msra.mxu0 0
        %1441 = vmatprep.subr.bf16.mxu0 0
        %1442 = vmatpush2.bf16.xpose.msra.mxu0 0
        %1443 = vmatprep.subr.bf16.mxu0 0
        %1444 = vmatpush2.bf16.xpose.msra.mxu0 0
        %1445 = vmatprep.mubr.bf16.mxu0 0
        %1446 = vmatmul.mubr.bf16.gmra.mxu0 %v1408
        %v1447 = vpop.f32.mrf.mxu0
        %v1448 = vadd.f32 0.0, %v1447
        %v1449 = vpop.f32.mrf.mxu0
        %v1450 = vpop.f32.mrf.mxu0
        %v1451 = vpop.f32.mrf.mxu0
        %1452 = vdwg.mxu0
        %v1454 = vsel %vm1406, %v1399, 0
        %v1457 = vsel %vm1406, %v1403, 0
        %1459 = vmatprep.subr.bf16.mxu0 0
        %1460 = vmatpush1.bf16.xpose.msra.mxu0 0
        %1461 = vmatprep.subr.bf16.mxu0 0
        %1462 = vmatpush1.bf16.xpose.msra.mxu0 0
        %1463 = vmatprep.subr.bf16.mxu0 0
        %1464 = vmatpush1.bf16.xpose.msra.mxu0 0
        %1465 = vmatprep.subr.bf16.mxu0 0
        %1466 = vmatpush1.bf16.xpose.msra.mxu0 0
        %1467 = vmatprep.subr.bf16.mxu0 0
        %1468 = vmatpush1.bf16.xpose.msra.mxu0 0
        %1469 = vmatprep.subr.bf16.mxu0 0
        %1470 = vmatpush1.bf16.xpose.msra.mxu0 0
        %1471 = vmatprep.subr.bf16.mxu0 0
        %1472 = vmatpush1.bf16.xpose.msra.mxu0 0
        %1473 = vmatprep.subr.bf16.mxu0 0
        %1474 = vmatpush1.bf16.xpose.msra.mxu0 %v1457
        %1475 = vmatprep.subr.bf16.mxu0 0
        %1476 = vmatpush2.bf16.xpose.msra.mxu0 0
        %1477 = vmatprep.subr.bf16.mxu0 0
        %1478 = vmatpush2.bf16.xpose.msra.mxu0 0
        %1479 = vmatprep.subr.bf16.mxu0 0
        %1480 = vmatpush2.bf16.xpose.msra.mxu0 0
        %1481 = vmatprep.subr.bf16.mxu0 0
        %1482 = vmatpush2.bf16.xpose.msra.mxu0 0
        %1483 = vmatprep.subr.bf16.mxu0 0
        %1484 = vmatpush2.bf16.xpose.msra.mxu0 0
        %1485 = vmatprep.subr.bf16.mxu0 0
        %1486 = vmatpush2.bf16.xpose.msra.mxu0 0
        %1487 = vmatprep.subr.bf16.mxu0 0
        %1488 = vmatpush2.bf16.xpose.msra.mxu0 0
        %1489 = vmatprep.subr.bf16.mxu0 0
        %1490 = vmatpush2.bf16.xpose.msra.mxu0 0
        %1491 = vmatprep.mubr.bf16.mxu0 0
        %1492 = vmatmul.mubr.bf16.gmra.mxu0 %v1454
        %v1493 = vpop.f32.mrf.mxu0
        %v1494 = vadd.f32 0.0, %v1493
        %v1495 = vpop.f32.mrf.mxu0
        %v1496 = vpop.f32.mrf.mxu0
        %v1497 = vpop.f32.mrf.mxu0
        %1498 = vdwg.mxu0
        %v1500 = vsel %vm1406, %v1400, 0
        %v1503 = vsel %vm1406, %v1404, 0
        %1505 = vmatprep.subr.bf16.mxu0 0
        %1506 = vmatpush1.bf16.xpose.msra.mxu0 0
        %1507 = vmatprep.subr.bf16.mxu0 0
        %1508 = vmatpush1.bf16.xpose.msra.mxu0 0
        %1509 = vmatprep.subr.bf16.mxu0 0
        %1510 = vmatpush1.bf16.xpose.msra.mxu0 0
        %1511 = vmatprep.subr.bf16.mxu0 0
        %1512 = vmatpush1.bf16.xpose.msra.mxu0 0
        %1513 = vmatprep.subr.bf16.mxu0 0
        %1514 = vmatpush1.bf16.xpose.msra.mxu0 0
        %1515 = vmatprep.subr.bf16.mxu0 0
        %1516 = vmatpush1.bf16.xpose.msra.mxu0 0
        %1517 = vmatprep.subr.bf16.mxu0 0
        %1518 = vmatpush1.bf16.xpose.msra.mxu0 0
        %1519 = vmatprep.subr.bf16.mxu0 0
        %1520 = vmatpush1.bf16.xpose.msra.mxu0 %v1503
        %1521 = vmatprep.subr.bf16.mxu0 0
        %1522 = vmatpush2.bf16.xpose.msra.mxu0 0
        %1523 = vmatprep.subr.bf16.mxu0 0
        %1524 = vmatpush2.bf16.xpose.msra.mxu0 0
        %1525 = vmatprep.subr.bf16.mxu0 0
        %1526 = vmatpush2.bf16.xpose.msra.mxu0 0
        %1527 = vmatprep.subr.bf16.mxu0 0
        %1528 = vmatpush2.bf16.xpose.msra.mxu0 0
        %1529 = vmatprep.subr.bf16.mxu0 0
        %1530 = vmatpush2.bf16.xpose.msra.mxu0 0
        %1531 = vmatprep.subr.bf16.mxu0 0
        %1532 = vmatpush2.bf16.xpose.msra.mxu0 0
        %1533 = vmatprep.subr.bf16.mxu0 0
        %1534 = vmatpush2.bf16.xpose.msra.mxu0 0
        %1535 = vmatprep.subr.bf16.mxu0 0
        %1536 = vmatpush2.bf16.xpose.msra.mxu0 0
        %1537 = vmatprep.mubr.bf16.mxu0 0
        %1538 = vmatmul.mubr.bf16.gmra.mxu0 %v1500
        %v1539 = vpop.f32.mrf.mxu0
        %v1540 = vadd.f32 0.0, %v1539
        %v1541 = vpop.f32.mrf.mxu0
        %v1542 = vpop.f32.mrf.mxu0
        %v1543 = vpop.f32.mrf.mxu0
        %1544 = vdwg.mxu0
        %v1546 = vsel %vm1406, %v1401, 0
        %v1549 = vsel %vm1406, %v1405, 0
        %1551 = vmatprep.subr.bf16.mxu0 0
        %1552 = vmatpush1.bf16.xpose.msra.mxu0 0
        %1553 = vmatprep.subr.bf16.mxu0 0
        %1554 = vmatpush1.bf16.xpose.msra.mxu0 0
        %1555 = vmatprep.subr.bf16.mxu0 0
        %1556 = vmatpush1.bf16.xpose.msra.mxu0 0
        %1557 = vmatprep.subr.bf16.mxu0 0
        %1558 = vmatpush1.bf16.xpose.msra.mxu0 0
        %1559 = vmatprep.subr.bf16.mxu0 0
        %1560 = vmatpush1.bf16.xpose.msra.mxu0 0
        %1561 = vmatprep.subr.bf16.mxu0 0
        %1562 = vmatpush1.bf16.xpose.msra.mxu0 0
        %1563 = vmatprep.subr.bf16.mxu0 0
        %1564 = vmatpush1.bf16.xpose.msra.mxu0 0
        %1565 = vmatprep.subr.bf16.mxu0 0
        %1566 = vmatpush1.bf16.xpose.msra.mxu0 %v1549
        %1567 = vmatprep.subr.bf16.mxu0 0
        %1568 = vmatpush2.bf16.xpose.msra.mxu0 0
        %1569 = vmatprep.subr.bf16.mxu0 0
        %1570 = vmatpush2.bf16.xpose.msra.mxu0 0
        %1571 = vmatprep.subr.bf16.mxu0 0
        %1572 = vmatpush2.bf16.xpose.msra.mxu0 0
        %1573 = vmatprep.subr.bf16.mxu0 0
        %1574 = vmatpush2.bf16.xpose.msra.mxu0 0
        %1575 = vmatprep.subr.bf16.mxu0 0
        %1576 = vmatpush2.bf16.xpose.msra.mxu0 0
        %1577 = vmatprep.subr.bf16.mxu0 0
        %1578 = vmatpush2.bf16.xpose.msra.mxu0 0
        %1579 = vmatprep.subr.bf16.mxu0 0
        %1580 = vmatpush2.bf16.xpose.msra.mxu0 0
        %1581 = vmatprep.subr.bf16.mxu0 0
        %1582 = vmatpush2.bf16.xpose.msra.mxu0 0
        %1583 = vmatprep.mubr.bf16.mxu0 0
        %1584 = vmatmul.mubr.bf16.gmra.mxu0 %v1546
        %v1585 = vpop.f32.mrf.mxu0
        %v1586 = vadd.f32 0.0, %v1585
        %v1587 = vpop.f32.mrf.mxu0
        %v1588 = vpop.f32.mrf.mxu0
        %v1589 = vpop.f32.mrf.mxu0
        %1590 = vdwg.mxu0
        %v1591 = vsel %vm1406, %v1448, -inf
        %1592 = vmax.xlane.f32.xlu0 %v1591
        %v1593 = vpop.xlane.xlu0 %1592
        %v1594 = vsel %vm1406, %v1494, -inf
        %1595 = vmax.xlane.f32.xlu0 %v1594
        %v1596 = vpop.xlane.xlu0 %1595
        %v1597 = vsel %vm1406, %v1540, -inf
        %1598 = vmax.xlane.f32.xlu0 %v1597
        %v1599 = vpop.xlane.xlu0 %1598
        %v1600 = vsel %vm1406, %v1586, -inf
        %1601 = vmax.xlane.f32.xlu0 %v1600
        %v1602 = vpop.xlane.xlu0 %1601
        %v1603 = vsub.f32 %v1448, %v1593
        %v1604 = vsub.f32 %v1494, %v1596
        %v1605 = vsub.f32 %v1540, %v1599
        %v1606 = vsub.f32 %v1586, %v1602
        %v1607 = vmul.f32 %v1603, 1.442695
        %v1608 = vpow.pop %v1607
        %v1609 = vmul.f32 %v1604, 1.442695
        %v1610 = vpow.pop %v1609
        %v1611 = vmul.f32 %v1605, 1.442695
        %v1612 = vpow.pop %v1611
        %v1613 = vmul.f32 %v1606, 1.442695
        %v1614 = vpow.pop %v1613
        %v1615 = vsel %vm1406, %v1608, 0.0
        %1616 = vadd.xlane.f32.xlu0 %v1615
        %v1617 = vpop.xlane.xlu0 %1616
        %v1618 = vsel %vm1406, %v1610, 0.0
        %1619 = vadd.xlane.f32.xlu0 %v1618
        %v1620 = vpop.xlane.xlu0 %1619
        %v1621 = vsel %vm1406, %v1612, 0.0
        %1622 = vadd.xlane.f32.xlu0 %v1621
        %v1623 = vpop.xlane.xlu0 %1622
        %v1624 = vsel %vm1406, %v1614, 0.0
        %1625 = vadd.xlane.f32.xlu0 %v1624
        %v1626 = vpop.xlane.xlu0 %1625
        %v1627 = vpack.c.bf16 %v1608, %v1608
        %v1628 = vpack.c.bf16 %v1610, %v1610
        %v1629 = vpack.c.bf16 %v1612, %v1612
        %v1630 = vpack.c.bf16 %v1614, %v1614
        %v1631 = vpack.c.bf16 %v1237, %v1237
        %v1632 = vpack.c.bf16 %v1289, %v1289
        %v1633 = vpack.c.bf16 %v1341, %v1341
        %v1634 = vpack.c.bf16 %v1393, %v1393
        %v1636 = vsel %vm1406, %v1627, 0
        %vm1638 = vcmask 1043456
        %v1640 = vsel %vm1638, %v1631, 0
        %1642 = vmatprep.subr.bf16.mxu0 0
        %1643 = vmatpush1.bf16.msra.mxu0 0
        %1644 = vmatprep.subr.bf16.mxu0 0
        %1645 = vmatpush1.bf16.msra.mxu0 0
        %1646 = vmatprep.subr.bf16.mxu0 0
        %1647 = vmatpush1.bf16.msra.mxu0 0
        %1648 = vmatprep.subr.bf16.mxu0 0
        %1649 = vmatpush1.bf16.msra.mxu0 0
        %1650 = vmatprep.subr.bf16.mxu0 0
        %1651 = vmatpush1.bf16.msra.mxu0 0
        %1652 = vmatprep.subr.bf16.mxu0 0
        %1653 = vmatpush1.bf16.msra.mxu0 0
        %1654 = vmatprep.subr.bf16.mxu0 0
        %1655 = vmatpush1.bf16.msra.mxu0 0
        %1656 = vmatprep.subr.bf16.mxu0 0
        %1657 = vmatpush1.bf16.msra.mxu0 %v1640
        %1658 = vmatprep.subr.bf16.mxu0 0
        %1659 = vmatpush2.bf16.msra.mxu0 0
        %1660 = vmatprep.subr.bf16.mxu0 0
        %1661 = vmatpush2.bf16.msra.mxu0 0
        %1662 = vmatprep.subr.bf16.mxu0 0
        %1663 = vmatpush2.bf16.msra.mxu0 0
        %1664 = vmatprep.subr.bf16.mxu0 0
        %1665 = vmatpush2.bf16.msra.mxu0 0
        %1666 = vmatprep.subr.bf16.mxu0 0
        %1667 = vmatpush2.bf16.msra.mxu0 0
        %1668 = vmatprep.subr.bf16.mxu0 0
        %1669 = vmatpush2.bf16.msra.mxu0 0
        %1670 = vmatprep.subr.bf16.mxu0 0
        %1671 = vmatpush2.bf16.msra.mxu0 0
        %1672 = vmatprep.subr.bf16.mxu0 0
        %1673 = vmatpush2.bf16.msra.mxu0 0
        %1674 = vmatprep.mubr.bf16.mxu0 0
        %1675 = vmatmul.mubr.bf16.gmra.mxu0 %v1636
        %v1676 = vpop.f32.mrf.mxu0
        %v1677 = vadd.f32 0.0, %v1676
        %v1678 = vpop.f32.mrf.mxu0
        %v1679 = vpop.f32.mrf.mxu0
        %v1680 = vpop.f32.mrf.mxu0
        %1681 = vdwg.mxu0
        %v1683 = vsel %vm1406, %v1628, 0
        %v1686 = vsel %vm1638, %v1632, 0
        %1688 = vmatprep.subr.bf16.mxu0 0
        %1689 = vmatpush1.bf16.msra.mxu0 0
        %1690 = vmatprep.subr.bf16.mxu0 0
        %1691 = vmatpush1.bf16.msra.mxu0 0
        %1692 = vmatprep.subr.bf16.mxu0 0
        %1693 = vmatpush1.bf16.msra.mxu0 0
        %1694 = vmatprep.subr.bf16.mxu0 0
        %1695 = vmatpush1.bf16.msra.mxu0 0
        %1696 = vmatprep.subr.bf16.mxu0 0
        %1697 = vmatpush1.bf16.msra.mxu0 0
        %1698 = vmatprep.subr.bf16.mxu0 0
        %1699 = vmatpush1.bf16.msra.mxu0 0
        %1700 = vmatprep.subr.bf16.mxu0 0
        %1701 = vmatpush1.bf16.msra.mxu0 0
        %1702 = vmatprep.subr.bf16.mxu0 0
        %1703 = vmatpush1.bf16.msra.mxu0 %v1686
        %1704 = vmatprep.subr.bf16.mxu0 0
        %1705 = vmatpush2.bf16.msra.mxu0 0
        %1706 = vmatprep.subr.bf16.mxu0 0
        %1707 = vmatpush2.bf16.msra.mxu0 0
        %1708 = vmatprep.subr.bf16.mxu0 0
        %1709 = vmatpush2.bf16.msra.mxu0 0
        %1710 = vmatprep.subr.bf16.mxu0 0
        %1711 = vmatpush2.bf16.msra.mxu0 0
        %1712 = vmatprep.subr.bf16.mxu0 0
        %1713 = vmatpush2.bf16.msra.mxu0 0
        %1714 = vmatprep.subr.bf16.mxu0 0
        %1715 = vmatpush2.bf16.msra.mxu0 0
        %1716 = vmatprep.subr.bf16.mxu0 0
        %1717 = vmatpush2.bf16.msra.mxu0 0
        %1718 = vmatprep.subr.bf16.mxu0 0
        %1719 = vmatpush2.bf16.msra.mxu0 0
        %1720 = vmatprep.mubr.bf16.mxu0 0
        %1721 = vmatmul.mubr.bf16.gmra.mxu0 %v1683
        %v1722 = vpop.f32.mrf.mxu0
        %v1723 = vadd.f32 0.0, %v1722
        %v1724 = vpop.f32.mrf.mxu0
        %v1725 = vpop.f32.mrf.mxu0
        %v1726 = vpop.f32.mrf.mxu0
        %1727 = vdwg.mxu0
        %v1729 = vsel %vm1406, %v1629, 0
        %v1732 = vsel %vm1638, %v1633, 0
        %1734 = vmatprep.subr.bf16.mxu0 0
        %1735 = vmatpush1.bf16.msra.mxu0 0
        %1736 = vmatprep.subr.bf16.mxu0 0
        %1737 = vmatpush1.bf16.msra.mxu0 0
        %1738 = vmatprep.subr.bf16.mxu0 0
        %1739 = vmatpush1.bf16.msra.mxu0 0
        %1740 = vmatprep.subr.bf16.mxu0 0
        %1741 = vmatpush1.bf16.msra.mxu0 0
        %1742 = vmatprep.subr.bf16.mxu0 0
        %1743 = vmatpush1.bf16.msra.mxu0 0
        %1744 = vmatprep.subr.bf16.mxu0 0
        %1745 = vmatpush1.bf16.msra.mxu0 0
        %1746 = vmatprep.subr.bf16.mxu0 0
        %1747 = vmatpush1.bf16.msra.mxu0 0
        %1748 = vmatprep.subr.bf16.mxu0 0
        %1749 = vmatpush1.bf16.msra.mxu0 %v1732
        %1750 = vmatprep.subr.bf16.mxu0 0
        %1751 = vmatpush2.bf16.msra.mxu0 0
        %1752 = vmatprep.subr.bf16.mxu0 0
        %1753 = vmatpush2.bf16.msra.mxu0 0
        %1754 = vmatprep.subr.bf16.mxu0 0
        %1755 = vmatpush2.bf16.msra.mxu0 0
        %1756 = vmatprep.subr.bf16.mxu0 0
        %1757 = vmatpush2.bf16.msra.mxu0 0
        %1758 = vmatprep.subr.bf16.mxu0 0
        %1759 = vmatpush2.bf16.msra.mxu0 0
        %1760 = vmatprep.subr.bf16.mxu0 0
        %1761 = vmatpush2.bf16.msra.mxu0 0
        %1762 = vmatprep.subr.bf16.mxu0 0
        %1763 = vmatpush2.bf16.msra.mxu0 0
        %1764 = vmatprep.subr.bf16.mxu0 0
        %1765 = vmatpush2.bf16.msra.mxu0 0
        %1766 = vmatprep.mubr.bf16.mxu0 0
        %1767 = vmatmul.mubr.bf16.gmra.mxu0 %v1729
        %v1768 = vpop.f32.mrf.mxu0
        %v1769 = vadd.f32 0.0, %v1768
        %v1770 = vpop.f32.mrf.mxu0
        %v1771 = vpop.f32.mrf.mxu0
        %v1772 = vpop.f32.mrf.mxu0
        %1773 = vdwg.mxu0
        %v1775 = vsel %vm1406, %v1630, 0
        %v1778 = vsel %vm1638, %v1634, 0
        %1780 = vmatprep.subr.bf16.mxu0 0
        %1781 = vmatpush1.bf16.msra.mxu0 0
        %1782 = vmatprep.subr.bf16.mxu0 0
        %1783 = vmatpush1.bf16.msra.mxu0 0
        %1784 = vmatprep.subr.bf16.mxu0 0
        %1785 = vmatpush1.bf16.msra.mxu0 0
        %1786 = vmatprep.subr.bf16.mxu0 0
        %1787 = vmatpush1.bf16.msra.mxu0 0
        %1788 = vmatprep.subr.bf16.mxu0 0
        %1789 = vmatpush1.bf16.msra.mxu0 0
        %1790 = vmatprep.subr.bf16.mxu0 0
        %1791 = vmatpush1.bf16.msra.mxu0 0
        %1792 = vmatprep.subr.bf16.mxu0 0
        %1793 = vmatpush1.bf16.msra.mxu0 0
        %1794 = vmatprep.subr.bf16.mxu0 0
        %1795 = vmatpush1.bf16.msra.mxu0 %v1778
        %1796 = vmatprep.subr.bf16.mxu0 0
        %1797 = vmatpush2.bf16.msra.mxu0 0
        %1798 = vmatprep.subr.bf16.mxu0 0
        %1799 = vmatpush2.bf16.msra.mxu0 0
        %1800 = vmatprep.subr.bf16.mxu0 0
        %1801 = vmatpush2.bf16.msra.mxu0 0
        %1802 = vmatprep.subr.bf16.mxu0 0
        %1803 = vmatpush2.bf16.msra.mxu0 0
        %1804 = vmatprep.subr.bf16.mxu0 0
        %1805 = vmatpush2.bf16.msra.mxu0 0
        %1806 = vmatprep.subr.bf16.mxu0 0
        %1807 = vmatpush2.bf16.msra.mxu0 0
        %1808 = vmatprep.subr.bf16.mxu0 0
        %1809 = vmatpush2.bf16.msra.mxu0 0
        %1810 = vmatprep.subr.bf16.mxu0 0
        %1811 = vmatpush2.bf16.msra.mxu0 0
        %1812 = vmatprep.mubr.bf16.mxu0 0
        %1813 = vmatmul.mubr.bf16.gmra.mxu0 %v1775
        %v1814 = vpop.f32.mrf.mxu0
        %v1815 = vadd.f32 0.0, %v1814
        %v1816 = vpop.f32.mrf.mxu0
        %v1817 = vpop.f32.mrf.mxu0
        %v1818 = vpop.f32.mrf.mxu0
        %1819 = vdwg.mxu0
        %v1820 = vrcp.pop %v1617
        %v1821 = vrcp.pop %v1620
        %v1822 = vrcp.pop %v1623
        %v1823 = vrcp.pop %v1626
        %v1824 = vmul.f32 %v1677, %v1820
        %v1825 = vmul.f32 %v1723, %v1821
        %v1826 = vmul.f32 %v1769, %v1822
        %v1827 = vmul.f32 %v1815, %v1823
        %v1828 = vpack.c.bf16 %v1824, %v1824
        %v1829 = vpack.c.bf16 %v1825, %v1825
        %v1830 = vpack.c.bf16 %v1826, %v1826
        %v1831 = vpack.c.bf16 %v1827, %v1827
        %v1832 = vld [vmem:[%s12] sm:$0xf]
        %v1833 = vld [vmem:[%s12 + $0x4] sm:$0xf]
        %v1834 = vld [vmem:[%s12 + $0x8] sm:$0xf]
        %v1835 = vld [vmem:[%s12 + $0xc] sm:$0xf]
        %v1837 = vsel %vm1406, %v1828, 0
        %v1840 = vsel %vm1638, %v1832, 0
        %1842 = vmatprep.subr.bf16.mxu0 0
        %1843 = vmatpush1.bf16.msra.mxu0 0
        %1844 = vmatprep.subr.bf16.mxu0 0
        %1845 = vmatpush1.bf16.msra.mxu0 0
        %1846 = vmatprep.subr.bf16.mxu0 0
        %1847 = vmatpush1.bf16.msra.mxu0 0
        %1848 = vmatprep.subr.bf16.mxu0 0
        %1849 = vmatpush1.bf16.msra.mxu0 0
        %1850 = vmatprep.subr.bf16.mxu0 0
        %1851 = vmatpush1.bf16.msra.mxu0 0
        %1852 = vmatprep.subr.bf16.mxu0 0
        %1853 = vmatpush1.bf16.msra.mxu0 0
        %1854 = vmatprep.subr.bf16.mxu0 0
        %1855 = vmatpush1.bf16.msra.mxu0 0
        %1856 = vmatprep.subr.bf16.mxu0 0
        %1857 = vmatpush1.bf16.msra.mxu0 %v1840
        %1858 = vmatprep.subr.bf16.mxu0 0
        %1859 = vmatpush2.bf16.msra.mxu0 0
        %1860 = vmatprep.subr.bf16.mxu0 0
        %1861 = vmatpush2.bf16.msra.mxu0 0
        %1862 = vmatprep.subr.bf16.mxu0 0
        %1863 = vmatpush2.bf16.msra.mxu0 0
        %1864 = vmatprep.subr.bf16.mxu0 0
        %1865 = vmatpush2.bf16.msra.mxu0 0
        %1866 = vmatprep.subr.bf16.mxu0 0
        %1867 = vmatpush2.bf16.msra.mxu0 0
        %1868 = vmatprep.subr.bf16.mxu0 0
        %1869 = vmatpush2.bf16.msra.mxu0 0
        %1870 = vmatprep.subr.bf16.mxu0 0
        %1871 = vmatpush2.bf16.msra.mxu0 0
        %1872 = vmatprep.subr.bf16.mxu0 0
        %1873 = vmatpush2.bf16.msra.mxu0 0
        %1874 = vmatprep.mubr.bf16.mxu0 0
        %1875 = vmatmul.mubr.bf16.gmra.mxu0 %v1837
        %v1876 = vpop.f32.mrf.mxu0
        %v1877 = vadd.f32 0.0, %v1876
        %v1878 = vpop.f32.mrf.mxu0
        %v1879 = vpop.f32.mrf.mxu0
        %v1880 = vpop.f32.mrf.mxu0
        %1881 = vdwg.mxu0
        %v1883 = vsel %vm1406, %v1829, 0
        %v1886 = vsel %vm1638, %v1833, 0
        %1888 = vmatprep.subr.bf16.mxu0 0
        %1889 = vmatpush1.bf16.msra.mxu0 0
        %1890 = vmatprep.subr.bf16.mxu0 0
        %1891 = vmatpush1.bf16.msra.mxu0 0
        %1892 = vmatprep.subr.bf16.mxu0 0
        %1893 = vmatpush1.bf16.msra.mxu0 0
        %1894 = vmatprep.subr.bf16.mxu0 0
        %1895 = vmatpush1.bf16.msra.mxu0 0
        %1896 = vmatprep.subr.bf16.mxu0 0
        %1897 = vmatpush1.bf16.msra.mxu0 0
        %1898 = vmatprep.subr.bf16.mxu0 0
        %1899 = vmatpush1.bf16.msra.mxu0 0
        %1900 = vmatprep.subr.bf16.mxu0 0
        %1901 = vmatpush1.bf16.msra.mxu0 0
        %1902 = vmatprep.subr.bf16.mxu0 0
        %1903 = vmatpush1.bf16.msra.mxu0 %v1886
        %1904 = vmatprep.subr.bf16.mxu0 0
        %1905 = vmatpush2.bf16.msra.mxu0 0
        %1906 = vmatprep.subr.bf16.mxu0 0
        %1907 = vmatpush2.bf16.msra.mxu0 0
        %1908 = vmatprep.subr.bf16.mxu0 0
        %1909 = vmatpush2.bf16.msra.mxu0 0
        %1910 = vmatprep.subr.bf16.mxu0 0
        %1911 = vmatpush2.bf16.msra.mxu0 0
        %1912 = vmatprep.subr.bf16.mxu0 0
        %1913 = vmatpush2.bf16.msra.mxu0 0
        %1914 = vmatprep.subr.bf16.mxu0 0
        %1915 = vmatpush2.bf16.msra.mxu0 0
        %1916 = vmatprep.subr.bf16.mxu0 0
        %1917 = vmatpush2.bf16.msra.mxu0 0
        %1918 = vmatprep.subr.bf16.mxu0 0
        %1919 = vmatpush2.bf16.msra.mxu0 0
        %1920 = vmatprep.mubr.bf16.mxu0 0
        %1921 = vmatmul.mubr.bf16.gmra.mxu0 %v1883
        %v1922 = vpop.f32.mrf.mxu0
        %v1923 = vadd.f32 0.0, %v1922
        %v1924 = vpop.f32.mrf.mxu0
        %v1925 = vpop.f32.mrf.mxu0
        %v1926 = vpop.f32.mrf.mxu0
        %1927 = vdwg.mxu0
        %v1929 = vsel %vm1406, %v1830, 0
        %v1932 = vsel %vm1638, %v1834, 0
        %1934 = vmatprep.subr.bf16.mxu0 0
        %1935 = vmatpush1.bf16.msra.mxu0 0
        %1936 = vmatprep.subr.bf16.mxu0 0
        %1937 = vmatpush1.bf16.msra.mxu0 0
        %1938 = vmatprep.subr.bf16.mxu0 0
        %1939 = vmatpush1.bf16.msra.mxu0 0
        %1940 = vmatprep.subr.bf16.mxu0 0
        %1941 = vmatpush1.bf16.msra.mxu0 0
        %1942 = vmatprep.subr.bf16.mxu0 0
        %1943 = vmatpush1.bf16.msra.mxu0 0
        %1944 = vmatprep.subr.bf16.mxu0 0
        %1945 = vmatpush1.bf16.msra.mxu0 0
        %1946 = vmatprep.subr.bf16.mxu0 0
        %1947 = vmatpush1.bf16.msra.mxu0 0
        %1948 = vmatprep.subr.bf16.mxu0 0
        %1949 = vmatpush1.bf16.msra.mxu0 %v1932
        %1950 = vmatprep.subr.bf16.mxu0 0
        %1951 = vmatpush2.bf16.msra.mxu0 0
        %1952 = vmatprep.subr.bf16.mxu0 0
        %1953 = vmatpush2.bf16.msra.mxu0 0
        %1954 = vmatprep.subr.bf16.mxu0 0
        %1955 = vmatpush2.bf16.msra.mxu0 0
        %1956 = vmatprep.subr.bf16.mxu0 0
        %1957 = vmatpush2.bf16.msra.mxu0 0
        %1958 = vmatprep.subr.bf16.mxu0 0
        %1959 = vmatpush2.bf16.msra.mxu0 0
        %1960 = vmatprep.subr.bf16.mxu0 0
        %1961 = vmatpush2.bf16.msra.mxu0 0
        %1962 = vmatprep.subr.bf16.mxu0 0
        %1963 = vmatpush2.bf16.msra.mxu0 0
        %1964 = vmatprep.subr.bf16.mxu0 0
        %1965 = vmatpush2.bf16.msra.mxu0 0
        %1966 = vmatprep.mubr.bf16.mxu0 0
        %1967 = vmatmul.mubr.bf16.gmra.mxu0 %v1929
        %v1968 = vpop.f32.mrf.mxu0
        %v1969 = vadd.f32 0.0, %v1968
        %v1970 = vpop.f32.mrf.mxu0
        %v1971 = vpop.f32.mrf.mxu0
        %v1972 = vpop.f32.mrf.mxu0
        %1973 = vdwg.mxu0
        %v1975 = vsel %vm1406, %v1831, 0
        %v1978 = vsel %vm1638, %v1835, 0
        %1980 = vmatprep.subr.bf16.mxu0 0
        %1981 = vmatpush1.bf16.msra.mxu0 0
        %1982 = vmatprep.subr.bf16.mxu0 0
        %1983 = vmatpush1.bf16.msra.mxu0 0
        %1984 = vmatprep.subr.bf16.mxu0 0
        %1985 = vmatpush1.bf16.msra.mxu0 0
        %1986 = vmatprep.subr.bf16.mxu0 0
        %1987 = vmatpush1.bf16.msra.mxu0 0
        %1988 = vmatprep.subr.bf16.mxu0 0
        %1989 = vmatpush1.bf16.msra.mxu0 0
        %1990 = vmatprep.subr.bf16.mxu0 0
        %1991 = vmatpush1.bf16.msra.mxu0 0
        %1992 = vmatprep.subr.bf16.mxu0 0
        %1993 = vmatpush1.bf16.msra.mxu0 0
        %1994 = vmatprep.subr.bf16.mxu0 0
        %1995 = vmatpush1.bf16.msra.mxu0 %v1978
        %1996 = vmatprep.subr.bf16.mxu0 0
        %1997 = vmatpush2.bf16.msra.mxu0 0
        %1998 = vmatprep.subr.bf16.mxu0 0
        %1999 = vmatpush2.bf16.msra.mxu0 0
        %2000 = vmatprep.subr.bf16.mxu0 0
        %2001 = vmatpush2.bf16.msra.mxu0 0
        %2002 = vmatprep.subr.bf16.mxu0 0
        %2003 = vmatpush2.bf16.msra.mxu0 0
        %2004 = vmatprep.subr.bf16.mxu0 0
        %2005 = vmatpush2.bf16.msra.mxu0 0
        %2006 = vmatprep.subr.bf16.mxu0 0
        %2007 = vmatpush2.bf16.msra.mxu0 0
        %2008 = vmatprep.subr.bf16.mxu0 0
        %2009 = vmatpush2.bf16.msra.mxu0 0
        %2010 = vmatprep.subr.bf16.mxu0 0
        %2011 = vmatpush2.bf16.msra.mxu0 0
        %2012 = vmatprep.mubr.bf16.mxu0 0
        %2013 = vmatmul.mubr.bf16.gmra.mxu0 %v1975
        %v2014 = vpop.f32.mrf.mxu0
        %v2015 = vadd.f32 0.0, %v2014
        %v2016 = vpop.f32.mrf.mxu0
        %v2017 = vpop.f32.mrf.mxu0
        %v2018 = vpop.f32.mrf.mxu0
        %2019 = vdwg.mxu0
        %v2020 = vsel %vm688, %v1877, 0.0
        %v2021 = vsel %vm688, %v1923, 0.0
        %v2022 = vadd.f32 %v2020, %v2021
        %v2023 = vsel %vm688, %v1969, 0.0
        %v2024 = vadd.f32 %v2022, %v2023
        %v2025 = vsel %vm688, %v2015, 0.0
        %v2026 = vadd.f32 %v2024, %v2025
        %v2027 = vld [vmem:[%s13] sm:$0x1]
        %v2029 = vlaneseq
        %v2030 = vshrl.u32 %v2029, 7
        %v2031 = vsub.s32 0, %v2030
        %v2032 = vrot.slane %v2027, %v2031
        %v2034 = vadd.f32 %v2026, %v2032
        %v2035 = vld [vmem:[%s616] sm:$0xff]
        %v2036 = vadd.f32 %v2034, %v2035
        %2037 = vst.msk [vmem:[%s620] sm:$0xff] %vm688, %v2036
        %p2038 = scmp.lt.s32.totalorder %s28, 1
        %s2039 = scalar_select %p2038, %s28, 1
        %s2040 = smul.addr %s2039, 8
        %s2041 = scalar_lea.vmem %s14, %s2040
        // Predicated region
        $region97: #{multihead_attention_forward.1} parent=75 // pred_check
          %p2042 = pneg %p370
        $region98: #{multihead_attention_forward.1} parent=75 // pred_check_branch
          %2044 = sbr.rel (%p2042) target = $region100
        $region99: #{multihead_attention_forward.1} parent=75 // pred_region
          _
        $region100: #{multihead_attention_forward.1} parent=75 // pred_fallthru
          _
      $region76: #{multihead_attention_forward.1} parent=5 // pred_fallthru
        _
      %p2045 = scmp.le.s32.totalorder 2, %s23
      // Predicated region
      $region101: #{multihead_attention_forward.1} parent=5 // pred_check
        %p2046 = pneg %p2045
      $region102: #{multihead_attention_forward.1} parent=5 // pred_check_branch
        %2048 = sbr.rel (%p2046) target = $region104
      $region103: #{multihead_attention_forward.1} parent=5 // pred_region
        %s2049 = ssub.s32 %s23, 2
        // Predicated region
        $region105: #{multihead_attention_forward.1} parent=103 // pred_check
          %p2050 = pneg %p376
        $region106: #{multihead_attention_forward.1} parent=103 // pred_check_branch
          %2052 = sbr.rel (%p2050) target = $region108
        $region107: #{multihead_attention_forward.1} parent=103 // pred_region
          %p2053 = scmp.lt.s32.totalorder %s29, 1
          %s2054 = scalar_select %p2053, %s29, 1
          %s2055 = smul.addr %s2054, 8
          %s2056 = scalar_lea.vmem %s14, %s2055
        $region108: #{multihead_attention_forward.1} parent=103 // pred_fallthru
          _
      $region104: #{multihead_attention_forward.1} parent=5 // pred_fallthru
        _
    $region6: #{multihead_attention_forward.1} parent=1 // loop_footer
      %s27 = sadd.s32 1, %s23
    $region7: #{multihead_attention_forward.1} parent=1 // loop_footer_branch
      %22 = sbr.rel target = $region3
    $region8: #{multihead_attention_forward.1} parent=1 // loop_exit
      _
    %2057 = vsyncpa [#allocation3], 1
    %s2058 = scalar_lea.sflag [#allocation3], 1
    %2059 = vsyncpa %s2058, 1
    %2060 = vsyncpa [#allocation5], 1
    %2061 = vsyncpa [#allocation8], 1

</llo_original>
